<compile_context>
chip_gen: v5e
topology: v5e:2x2
jax: 0.10.0
libtpu: 0.0.40
codegen_flags: <defaults>
</compile_context>

<pallas_src>
import numpy as np
import jax
import jax.numpy as jnp
from jax import lax
from jax.experimental import pallas as pl
from jax.experimental.pallas import tpu as pltpu

VIS_DIM = 768
META_HIDDEN = (2 * VIS_DIM) // 16   # 96
CTX_DIM = 8


def _vmem_spec():
    return pl.BlockSpec(memory_space=pltpu.MemorySpace.VMEM)


def _smem_spec():
    return pl.BlockSpec(memory_space=pltpu.MemorySpace.SMEM)


# ---------------- fused kernel ----------------

_EPS = 1e-12


def _l2_coef(x, scale=1.0):
    # Per-row coefficient of F.normalize(x, p=2, dim=-1), optionally fused with a
    # scalar logit scale:  coef = scale * rsqrt(max(sum(x*x), eps^2))
    ss = jnp.sum(x * x, axis=-1, keepdims=True)
    return scale * lax.rsqrt(jnp.maximum(ss, _EPS * _EPS))


def fvl_fused_kernel(scales_ref,                       # SMEM (2,) = exp(img/txt logit scale)
                     x_ref, img_ref, txt_ref,          # (B,768) each
                     wp_ref, bp_ref,                   # fmri_projector  (768,768), (1,768)
                     w1f_ref, w1i_ref, b1_ref,         # meta_net.linear1 split  (768,96)x2, (1,96)
                     w2_ref, b2_ref, ctx_ref,          # meta_net.linear2 (96,8), (1,8), context (1,8)
                     fmri_out_ref, ctx_out_ref, logits_ref):
    # 1) fmri_features = fmri_projector(unproj_fmri_features)   (stays resident in VMEM)
    fmri = (jnp.dot(x_ref[...], wp_ref[...], preferred_element_type=jnp.float32)
            + bp_ref[...])
    fmri_out_ref[...] = fmri

    # 2) context_vector = meta_net(cat([fmri, img])) + self.context_vector
    #    concatenate eliminated by splitting linear1's weight along its input dim.
    img = img_ref[...]
    h = (jnp.dot(fmri, w1f_ref[...], preferred_element_type=jnp.float32)
         + jnp.dot(img, w1i_ref[...], preferred_element_type=jnp.float32)
         + b1_ref[...])
    h = jnp.maximum(h, 0.0)                                          # ReLU
    ctx_out_ref[...] = (jnp.dot(h, w2_ref[...], preferred_element_type=jnp.float32)
                        + b2_ref[...] + ctx_ref[...])

    # 3) L2 normalize + scaled contrastive logits.
    #    dot_general contracting (1,1) == A @ B.T without materializing a transpose.
    #    The exp(logit_scale) factors are folded into the image/text normalization
    #    coefficients so no extra (B,B) scaling pass is needed after the matmul.
    txt = txt_ref[...]
    nf = fmri * _l2_coef(fmri)
    ni = img * _l2_coef(img, scales_ref[0])
    nt = txt * _l2_coef(txt, scales_ref[1])
    dn = (((1,), (1,)), ((), ()))
    logits_ref[0, :, :] = lax.dot_general(nf, ni, dn, preferred_element_type=jnp.float32)
    logits_ref[1, :, :] = lax.dot_general(nf, nt, dn, preferred_element_type=jnp.float32)


# ---------------- wrapper ----------------

def init_params(key):
    ks = jax.random.split(key, 4)
    scale = 0.02
    # meta_net.linear1 weight (1536,96) stored pre-split along the input dim:
    # rows [0:768) act on fmri_features, rows [768:1536) on image_features.
    return {
        "w_proj": jax.random.normal(ks[0], (VIS_DIM, VIS_DIM), jnp.float32) * scale,
        "b_proj": jnp.zeros((1, VIS_DIM), jnp.float32),
        "w1_fmri": jax.random.normal(ks[1], (VIS_DIM, META_HIDDEN), jnp.float32) * scale,
        "w1_img": jax.random.normal(ks[2], (VIS_DIM, META_HIDDEN), jnp.float32) * scale,
        "b1": jnp.zeros((1, META_HIDDEN), jnp.float32),
        "w2": jax.random.normal(ks[3], (META_HIDDEN, CTX_DIM), jnp.float32) * scale,
        "b2": jnp.zeros((1, CTX_DIM), jnp.float32),
        "context_vector": jnp.zeros((1, CTX_DIM), jnp.float32),     # nn.Parameter(zeros)
        "img_logit_scale": jnp.float32(np.log(1.0 / 0.07)),
        "txt_logit_scale": jnp.float32(np.log(1.0 / 0.07)),
    }


def fvl_forward(unproj_fmri_features, image_features, text_features, params):
    # TODO(synk): fmri_encoder / CLIP.embed_image / CLIP.embed_text / clip.tokenize /
    # integrate_context_vector and training-time data augmentations are external
    # (frozen) sub-models with no clean Pallas equivalent; their outputs are inputs here.
    B = unproj_fmri_features.shape[0]

    # exp of the two log logit-scales stays in the wrapper (scalar transcendental in
    # SMEM has no guaranteed Mosaic lowering); passed to the kernel through SMEM.
    scales = jnp.exp(jnp.stack([params["img_logit_scale"], params["txt_logit_scale"]]))

    fmri_features, context_vector, logits = pl.pallas_call(
        fvl_fused_kernel,
        out_shape=(
            jax.ShapeDtypeStruct((B, VIS_DIM), jnp.float32),   # fmri_features
            jax.ShapeDtypeStruct((B, CTX_DIM), jnp.float32),   # context_vector (pre-f16)
            jax.ShapeDtypeStruct((2, B, B), jnp.float32),      # stacked logits
        ),
        in_specs=[_smem_spec()] + [_vmem_spec()] * 11,
        out_specs=(_vmem_spec(), _vmem_spec(), _vmem_spec()),
    )(scales,
      unproj_fmri_features, image_features, text_features,
      params["w_proj"], params["b_proj"],
      params["w1_fmri"], params["w1_img"], params["b1"],
      params["w2"], params["b2"], params["context_vector"])

    # PyTorch meta_net is .half(); mimic the output dtype (cast kept outside the kernel
    # since fp16 stores are not a guaranteed Mosaic path; (B,8) cast is negligible).
    context_vector = context_vector.astype(jnp.float16)

    return {
        "logits": logits,
        "fmri_features": fmri_features,
        "voxel_features": None,
        "image_features": image_features,
        "text_features": text_features,
        "unproj_fmri_features": unproj_fmri_features,
        "context_vector": context_vector,
    }


def fvl_forward_ref(unproj, img, txt, params):
    """Pure-JAX reference for correctness check."""
    fmri = unproj @ params["w_proj"] + params["b_proj"]
    h = jnp.maximum(fmri @ params["w1_fmri"] + img @ params["w1_img"] + params["b1"], 0.0)
    ctx = (h @ params["w2"] + params["b2"] + params["context_vector"]).astype(jnp.float16)

    def norm(x):
        return x / jnp.maximum(jnp.linalg.norm(x, axis=-1, keepdims=True), 1e-12)

    nf, ni, nt = norm(fmri), norm(img), norm(txt)
    l0 = jnp.exp(params["img_logit_scale"]) * nf @ ni.T
    l1 = jnp.exp(params["txt_logit_scale"]) * nf @ nt.T
    return jnp.stack([l0, l1], axis=0), fmri, ctx


if __name__ == "__main__":
    B = 8
    key = jax.random.PRNGKey(0)
    k_in, k_img, k_txt, k_par = jax.random.split(key, 4)

    # Stand-ins for the frozen sub-model outputs.
    unproj_fmri_features = jax.random.normal(k_in, (B, VIS_DIM), jnp.float32)
    image_features = jax.random.normal(k_img, (B, VIS_DIM), jnp.float32)
    text_features = jax.random.normal(k_txt, (B, VIS_DIM), jnp.float32)

    params = init_params(k_par)

    out = fvl_forward(unproj_fmri_features, image_features, text_features, params)
    jax.block_until_ready(out["logits"])

    ref_logits, ref_fmri, ref_ctx = fvl_forward_ref(
        unproj_fmri_features, image_features, text_features, params)
    np.testing.assert_allclose(np.asarray(out["fmri_features"]), np.asarray(ref_fmri),
                               rtol=1e-4, atol=1e-4)
    np.testing.assert_allclose(np.asarray(out["context_vector"]).astype(np.float32),
                               np.asarray(ref_ctx).astype(np.float32),
                               rtol=1e-2, atol=1e-3)
    np.testing.assert_allclose(np.asarray(out["logits"]), np.asarray(ref_logits),
                               rtol=1e-4, atol=1e-4)

    print("KERNEL_OK")
</pallas_src>

<mosaic_0001>
module attributes {stable_mosaic.version = 11 : i64} {
  func.func @fvl_fused_kernel(%arg0: memref<2xf32, #tpu.memory_space<smem>>, %arg1: memref<8x768xf32, #tpu.memory_space<vmem>>, %arg2: memref<8x768xf32, #tpu.memory_space<vmem>>, %arg3: memref<8x768xf32, #tpu.memory_space<vmem>>, %arg4: memref<768x768xf32, #tpu.memory_space<vmem>>, %arg5: memref<1x768xf32, #tpu.memory_space<vmem>>, %arg6: memref<768x96xf32, #tpu.memory_space<vmem>>, %arg7: memref<768x96xf32, #tpu.memory_space<vmem>>, %arg8: memref<1x96xf32, #tpu.memory_space<vmem>>, %arg9: memref<96x8xf32, #tpu.memory_space<vmem>>, %arg10: memref<1x8xf32, #tpu.memory_space<vmem>>, %arg11: memref<1x8xf32, #tpu.memory_space<vmem>>, %arg12: memref<8x768xf32, #tpu.memory_space<vmem>>, %arg13: memref<8x8xf32, #tpu.memory_space<vmem>>, %arg14: memref<2x8x8xf32, #tpu.memory_space<vmem>>) attributes {dimension_semantics = [], scalar_prefetch = 0 : i64, scratch_operands = 0 : i64, tpu.core_type = #tpu.core_type<tc>} {
    %c0 = arith.constant 0 : index
    %c0_0 = arith.constant 0 : index
    %0 = vector.load %arg1[%c0, %c0_0] : memref<8x768xf32, #tpu.memory_space<vmem>>, vector<8x768xf32>
    %c0_1 = arith.constant 0 : index
    %c0_2 = arith.constant 0 : index
    %1 = vector.load %arg4[%c0_1, %c0_2] : memref<768x768xf32, #tpu.memory_space<vmem>>, vector<768x768xf32>
    %cst = arith.constant dense<0.000000e+00> : vector<8x768xf32>
    %2 = tpu.matmul %0, %1, %cst {dimension_numbers = #tpu.dot_dimension_numbers<[1], [0], [0], [1], [0, 0, 1, 1], [], []>} : vector<8x768xf32>, vector<768x768xf32>, vector<8x768xf32> -> vector<8x768xf32>
    %c0_3 = arith.constant 0 : index
    %c0_4 = arith.constant 0 : index
    %3 = vector.load %arg5[%c0_3, %c0_4] : memref<1x768xf32, #tpu.memory_space<vmem>>, vector<1x768xf32>
    %4 = vector.broadcast %3 : vector<1x768xf32> to vector<8x768xf32>
    %5 = arith.addf %2, %4 : vector<8x768xf32>
    %c0_5 = arith.constant 0 : index
    %c0_6 = arith.constant 0 : index
    %6 = vector.load %arg12[%c0_5, %c0_6] : memref<8x768xf32, #tpu.memory_space<vmem>>, vector<8x768xf32>
    tpu.vector_store %arg12[%c0_5, %c0_6], %5 {strides = array<i32>} : memref<8x768xf32, #tpu.memory_space<vmem>>, vector<8x768xf32>,
    %c0_7 = arith.constant 0 : index
    %c0_8 = arith.constant 0 : index
    %7 = vector.load %arg2[%c0_7, %c0_8] : memref<8x768xf32, #tpu.memory_space<vmem>>, vector<8x768xf32>
    %c0_9 = arith.constant 0 : index
    %c0_10 = arith.constant 0 : index
    %8 = vector.load %arg6[%c0_9, %c0_10] : memref<768x96xf32, #tpu.memory_space<vmem>>, vector<768x96xf32>
    %cst_11 = arith.constant dense<0.000000e+00> : vector<8x96xf32>
    %9 = tpu.matmul %5, %8, %cst_11 {dimension_numbers = #tpu.dot_dimension_numbers<[1], [0], [0], [1], [0, 0, 1, 1], [], []>} : vector<8x768xf32>, vector<768x96xf32>, vector<8x96xf32> -> vector<8x96xf32>
    %c0_12 = arith.constant 0 : index
    %c0_13 = arith.constant 0 : index
    %10 = vector.load %arg7[%c0_12, %c0_13] : memref<768x96xf32, #tpu.memory_space<vmem>>, vector<768x96xf32>
    %cst_14 = arith.constant dense<0.000000e+00> : vector<8x96xf32>
    %11 = tpu.matmul %7, %10, %cst_14 {dimension_numbers = #tpu.dot_dimension_numbers<[1], [0], [0], [1], [0, 0, 1, 1], [], []>} : vector<8x768xf32>, vector<768x96xf32>, vector<8x96xf32> -> vector<8x96xf32>
    %12 = arith.addf %9, %11 : vector<8x96xf32>
    %c0_15 = arith.constant 0 : index
    %c0_16 = arith.constant 0 : index
    %13 = vector.load %arg8[%c0_15, %c0_16] : memref<1x96xf32, #tpu.memory_space<vmem>>, vector<1x96xf32>
    %14 = vector.broadcast %13 : vector<1x96xf32> to vector<8x96xf32>
    %15 = arith.addf %12, %14 : vector<8x96xf32>
    %cst_17 = arith.constant 0.000000e+00 : f32
    %16 = vector.broadcast %cst_17 : f32 to vector<8x96xf32>
    %17 = arith.maximumf %15, %16 : vector<8x96xf32>
    %c0_18 = arith.constant 0 : index
    %c0_19 = arith.constant 0 : index
    %18 = vector.load %arg9[%c0_18, %c0_19] : memref<96x8xf32, #tpu.memory_space<vmem>>, vector<96x8xf32>
    %cst_20 = arith.constant dense<0.000000e+00> : vector<8x8xf32>
    %19 = tpu.matmul %17, %18, %cst_20 {dimension_numbers = #tpu.dot_dimension_numbers<[1], [0], [0], [1], [0, 0, 1, 1], [], []>} : vector<8x96xf32>, vector<96x8xf32>, vector<8x8xf32> -> vector<8x8xf32>
    %c0_21 = arith.constant 0 : index
    %c0_22 = arith.constant 0 : index
    %20 = vector.load %arg10[%c0_21, %c0_22] : memref<1x8xf32, #tpu.memory_space<vmem>>, vector<1x8xf32>
    %21 = vector.broadcast %20 : vector<1x8xf32> to vector<8x8xf32>
    %22 = arith.addf %19, %21 : vector<8x8xf32>
    %c0_23 = arith.constant 0 : index
    %c0_24 = arith.constant 0 : index
    %23 = vector.load %arg11[%c0_23, %c0_24] : memref<1x8xf32, #tpu.memory_space<vmem>>, vector<1x8xf32>
    %24 = vector.broadcast %23 : vector<1x8xf32> to vector<8x8xf32>
    %25 = arith.addf %22, %24 : vector<8x8xf32>
    %c0_25 = arith.constant 0 : index
    %c0_26 = arith.constant 0 : index
    %26 = vector.load %arg13[%c0_25, %c0_26] : memref<8x8xf32, #tpu.memory_space<vmem>>, vector<8x8xf32>
    tpu.vector_store %arg13[%c0_25, %c0_26], %25 {strides = array<i32>} : memref<8x8xf32, #tpu.memory_space<vmem>>, vector<8x8xf32>,
    %c0_27 = arith.constant 0 : index
    %c0_28 = arith.constant 0 : index
    %27 = vector.load %arg3[%c0_27, %c0_28] : memref<8x768xf32, #tpu.memory_space<vmem>>, vector<8x768xf32>
    %28 = arith.mulf %5, %5 : vector<8x768xf32>
    %cst_29 = arith.constant dense<0.000000e+00> : vector<8xf32>
    %29 = vector.multi_reduction <add>, %28, %cst_29 [1] : vector<8x768xf32> to vector<8xf32>
    %30 = vector.shape_cast %29 : vector<8xf32> to vector<8x1xf32>
    %cst_30 = arith.constant 1.000000e-24 : f32
    %31 = vector.broadcast %cst_30 : f32 to vector<8x1xf32>
    %32 = arith.maximumf %30, %31 : vector<8x1xf32>
    %33 = math.rsqrt %32 : vector<8x1xf32>
    %cst_31 = arith.constant 1.000000e+00 : f32
    %34 = vector.broadcast %cst_31 : f32 to vector<8x1xf32>
    %35 = arith.mulf %34, %33 : vector<8x1xf32>
    %36 = vector.broadcast %35 : vector<8x1xf32> to vector<8x768xf32>
    %37 = arith.mulf %5, %36 : vector<8x768xf32>
    %c0_32 = arith.constant 0 : index
    %38 = memref.load %arg0[%c0_32] : memref<2xf32, #tpu.memory_space<smem>>
    %39 = arith.mulf %7, %7 : vector<8x768xf32>
    %cst_33 = arith.constant dense<0.000000e+00> : vector<8xf32>
    %40 = vector.multi_reduction <add>, %39, %cst_33 [1] : vector<8x768xf32> to vector<8xf32>
    %41 = vector.shape_cast %40 : vector<8xf32> to vector<8x1xf32>
    %cst_34 = arith.constant 1.000000e-24 : f32
    %42 = vector.broadcast %cst_34 : f32 to vector<8x1xf32>
    %43 = arith.maximumf %41, %42 : vector<8x1xf32>
    %44 = math.rsqrt %43 : vector<8x1xf32>
    %45 = vector.broadcast %38 : f32 to vector<8x1xf32>
    %46 = arith.mulf %45, %44 : vector<8x1xf32>
    %47 = vector.broadcast %46 : vector<8x1xf32> to vector<8x768xf32>
    %48 = arith.mulf %7, %47 : vector<8x768xf32>
    %c1 = arith.constant 1 : index
    %49 = memref.load %arg0[%c1] : memref<2xf32, #tpu.memory_space<smem>>
    %50 = arith.mulf %27, %27 : vector<8x768xf32>
    %cst_35 = arith.constant dense<0.000000e+00> : vector<8xf32>
    %51 = vector.multi_reduction <add>, %50, %cst_35 [1] : vector<8x768xf32> to vector<8xf32>
    %52 = vector.shape_cast %51 : vector<8xf32> to vector<8x1xf32>
    %cst_36 = arith.constant 1.000000e-24 : f32
    %53 = vector.broadcast %cst_36 : f32 to vector<8x1xf32>
    %54 = arith.maximumf %52, %53 : vector<8x1xf32>
    %55 = math.rsqrt %54 : vector<8x1xf32>
    %56 = vector.broadcast %49 : f32 to vector<8x1xf32>
    %57 = arith.mulf %56, %55 : vector<8x1xf32>
    %58 = vector.broadcast %57 : vector<8x1xf32> to vector<8x768xf32>
    %59 = arith.mulf %27, %58 : vector<8x768xf32>
    %cst_37 = arith.constant dense<0.000000e+00> : vector<8x8xf32>
    %60 = tpu.matmul %37, %48, %cst_37 {dimension_numbers = #tpu.dot_dimension_numbers<[1], [1], [0], [0], [0, 0, 1, 0], [], []>} : vector<8x768xf32>, vector<8x768xf32>, vector<8x8xf32> -> vector<8x8xf32>
    %c0_38 = arith.constant 0 : index
    %c0_39 = arith.constant 0 : index
    %c0_40 = arith.constant 0 : index
    %61 = vector.load %arg14[%c0_38, %c0_39, %c0_40] : memref<2x8x8xf32, #tpu.memory_space<vmem>>, vector<1x8x8xf32>
    %62 = vector.shape_cast %61 : vector<1x8x8xf32> to vector<8x8xf32>
    %63 = vector.shape_cast %60 : vector<8x8xf32> to vector<1x8x8xf32>
    tpu.vector_store %arg14[%c0_38, %c0_39, %c0_40], %63 {strides = array<i32>} : memref<2x8x8xf32, #tpu.memory_space<vmem>>, vector<1x8x8xf32>,
    %cst_41 = arith.constant dense<0.000000e+00> : vector<8x8xf32>
    %64 = tpu.matmul %37, %59, %cst_41 {dimension_numbers = #tpu.dot_dimension_numbers<[1], [1], [0], [0], [0, 0, 1, 0], [], []>} : vector<8x768xf32>, vector<8x768xf32>, vector<8x8xf32> -> vector<8x8xf32>
    %c1_42 = arith.constant 1 : index
    %c0_43 = arith.constant 0 : index
    %c0_44 = arith.constant 0 : index
    %65 = vector.load %arg14[%c1_42, %c0_43, %c0_44] : memref<2x8x8xf32, #tpu.memory_space<vmem>>, vector<1x8x8xf32>
    %66 = vector.shape_cast %65 : vector<1x8x8xf32> to vector<8x8xf32>
    %67 = vector.shape_cast %64 : vector<8x8xf32> to vector<1x8x8xf32>
    tpu.vector_store %arg14[%c1_42, %c0_43, %c0_44], %67 {strides = array<i32>} : memref<2x8x8xf32, #tpu.memory_space<vmem>>, vector<1x8x8xf32>,
    return
  }
}

</mosaic_0001>

<llo_original>
// kernel: tpu_custom_call.1
$region0: #{tpu_custom_call.1}
  #allocation0 [shape = 'u32[]', space=smem, size = 0x4, offset = 0x4, fixed_abs, tag = 'smem constant byte address 0x4 - core index']
  #allocation1 [shape = 'u32[72,128]{1,0:T(1,128)}', space=vmem, size = 0x9000, scoped, tag = 'internal scratch']
  %s0 = inlined_call_operand.hbm [shape: f32[2], index: 0, kind: input, shape index: {}]
  %s1 = inlined_call_operand.hbm [shape: f32[8,768], index: 1, kind: input, shape index: {}]
  %s2 = inlined_call_operand.hbm [shape: f32[8,768], index: 2, kind: input, shape index: {}]
  %s3 = inlined_call_operand.hbm [shape: f32[8,768], index: 3, kind: input, shape index: {}]
  %s4 = inlined_call_operand.hbm [shape: f32[768,768], index: 4, kind: input, shape index: {}]
  %s5 = inlined_call_operand.hbm [shape: f32[1,768], index: 5, kind: input, shape index: {}]
  %s6 = inlined_call_operand.vmem [shape: f32[768,96], index: 6, kind: input, shape index: {}]
  %s7 = inlined_call_operand.vmem [shape: f32[768,96], index: 7, kind: input, shape index: {}]
  %s8 = inlined_call_operand.hbm [shape: f32[1,96], index: 8, kind: input, shape index: {}]
  %s9 = inlined_call_operand.vmem [shape: f32[96,8], index: 9, kind: input, shape index: {}]
  %s10 = inlined_call_operand.hbm [shape: f32[1,8], index: 10, kind: input, shape index: {}]
  %s11 = inlined_call_operand.hbm [shape: f32[1,8], index: 11, kind: input, shape index: {}]
  %s12 = inlined_call_operand.hbm [shape: f32[8,768], index: 12, kind: output, shape index: {0}]
  %s13 = inlined_call_operand.hbm [shape: f32[8,8], index: 13, kind: output, shape index: {1}]
  %s14 = inlined_call_operand.hbm [shape: f32[2,8,8], index: 14, kind: output, shape index: {2}]
  %15 = xla_tuple %s12, %s13, %s14
  %s16 = sld [smem:[#allocation0]]
  $region110: #{tpu_custom_call.1} parent=0
    _
  %s18 = ssub.s32 1, %s16
  %s19 = scalar_select 0, %s18, %s16
  $region1: #{tpu_custom_call.1} parent=0
    #allocation2 [shape = 'u8[512]{0}', space=smem, size = 0x200, scoped, tag = 'input window, operand 0, single buffered']
    #allocation3 [shape = 's32[1]{0}', space=sflag, size = 0x4, scoped, tag = 'scoped memory for tpu_custom_call.1']
    #allocation4 [shape = 's32[1]{0}', space=sflag, size = 0x4, scoped, tag = 'scoped memory for tpu_custom_call.1']
    #allocation5 [shape = 's32[1]{0}', space=sflag, size = 0x4, scoped, tag = 'scoped memory for tpu_custom_call.1']
    #allocation6 [shape = 'u8[24576]{0}', space=vmem, size = 0x6000, scoped, tag = 'input window, operand 1, single buffered']
    #allocation7 [shape = 'u8[24576]{0}', space=vmem, size = 0x6000, scoped, tag = 'input window, operand 2, single buffered']
    #allocation8 [shape = 's32[1]{0}', space=sflag, size = 0x4, scoped, tag = 'scoped memory for tpu_custom_call.1']
    #allocation9 [shape = 'u8[24576]{0}', space=vmem, size = 0x6000, scoped, tag = 'input window, operand 3, single buffered']
    #allocation10 [shape = 'u8[2359296]{0}', space=vmem, size = 0x240000, scoped, tag = 'input window, operand 4, single buffered']
    #allocation11 [shape = 's32[1]{0}', space=sflag, size = 0x4, scoped, tag = 'scoped memory for tpu_custom_call.1']
    #allocation12 [shape = 'u8[3072]{0}', space=vmem, size = 0xc00, scoped, tag = 'input window, operand 5, single buffered']
    #allocation13 [shape = 'u8[512]{0}', space=vmem, size = 0x400, scoped, tag = 'input window, operand 8, single buffered']
    #allocation14 [shape = 's32[1]{0}', space=sflag, size = 0x4, scoped, tag = 'scoped memory for tpu_custom_call.1']
    #allocation15 [shape = 'u8[512]{0}', space=vmem, size = 0x400, scoped, tag = 'input window, operand 10, single buffered']
    #allocation16 [shape = 'u8[512]{0}', space=vmem, size = 0x400, scoped, tag = 'input window, operand 11, single buffered']
    #allocation17 [shape = 's32[1]{0}', space=sflag, size = 0x4, scoped, tag = 'scoped memory for tpu_custom_call.1']
    #allocation18 [shape = 'u8[24576]{0}', space=vmem, size = 0x6000, scoped, tag = 'output window, operand 0, single buffered']
    #allocation19 [shape = 'u8[4096]{0}', space=vmem, size = 0x1000, scoped, tag = 'output window, operand 1, single buffered']
    #allocation20 [shape = 's32[1]{0}', space=sflag, size = 0x4, scoped, tag = 'scoped memory for tpu_custom_call.1']
    #allocation21 [shape = 'u8[8192]{0}', space=vmem, size = 0x2000, scoped, tag = 'output window, operand 2, single buffered']
    %20 = vsyncpa [#allocation5], 0
    %21 = vsyncpa [#allocation3], 0
    %22 = vsyncpa [#allocation8], 0
    %23 = vsyncpa [#allocation11], 0
    %24 = vsyncpa [#allocation14], 0
    %25 = vsyncpa [#allocation17], 0
    %26 = vsyncpa [#allocation4], 0
    %27 = vsyncpa [#allocation20], 0
    // Predicated region
    $region2: #{tpu_custom_call.1} parent=1 // pred_check
      _
    $region3: #{tpu_custom_call.1} parent=1 // pred_check_branch
      %29 = sbr.rel (0) target = $region5
    $region4: #{tpu_custom_call.1} parent=1 // pred_region
      %31 = vsyncadd [#allocation5], 0
      %s33 = sshll.u32 %s0, 4
      %s34 = int_to_ptr.hbm [resolvable:$true] %s33
      %36 = dma.hbm_to_smem %s34, 16, [#allocation2], [#allocation5]
    $region5: #{tpu_custom_call.1} parent=1 // pred_fallthru
      _
    // Predicated region
    $region6: #{tpu_custom_call.1} parent=1 // pred_check
      _
    $region7: #{tpu_custom_call.1} parent=1 // pred_check_branch
      %38 = sbr.rel (0) target = $region9
    $region8: #{tpu_custom_call.1} parent=1 // pred_region
      %40 = vsyncadd [#allocation3], 0
      %s42 = sshll.u32 %s1, 4
      %s43 = int_to_ptr.hbm [resolvable:$true] %s42
      %s44 = sshll.u32 [#allocation6], 4
      %s45 = int_to_ptr.vmem [resolvable:$true] %s44
      %47 = dma.hbm_to_vmem [thread:$0]  %s43, 768, %s45, [#allocation3]
    $region9: #{tpu_custom_call.1} parent=1 // pred_fallthru
      _
    // Predicated region
    $region10: #{tpu_custom_call.1} parent=1 // pred_check
      _
    $region11: #{tpu_custom_call.1} parent=1 // pred_check_branch
      %49 = sbr.rel (0) target = $region13
    $region12: #{tpu_custom_call.1} parent=1 // pred_region
      %51 = vsyncadd [#allocation8], 0
      %s53 = sshll.u32 %s2, 4
      %s54 = int_to_ptr.hbm [resolvable:$true] %s53
      %s55 = sshll.u32 [#allocation7], 4
      %s56 = int_to_ptr.vmem [resolvable:$true] %s55
      %58 = dma.hbm_to_vmem [thread:$0]  %s54, 768, %s56, [#allocation8]
    $region13: #{tpu_custom_call.1} parent=1 // pred_fallthru
      _
    // Predicated region
    $region14: #{tpu_custom_call.1} parent=1 // pred_check
      _
    $region15: #{tpu_custom_call.1} parent=1 // pred_check_branch
      %60 = sbr.rel (0) target = $region17
    $region16: #{tpu_custom_call.1} parent=1 // pred_region
      %62 = vsyncadd [#allocation8], 0
      %s64 = sshll.u32 %s3, 4
      %s65 = int_to_ptr.hbm [resolvable:$true] %s64
      %s66 = sshll.u32 [#allocation9], 4
      %s67 = int_to_ptr.vmem [resolvable:$true] %s66
      %69 = dma.hbm_to_vmem [thread:$0]  %s65, 768, %s67, [#allocation8]
    $region17: #{tpu_custom_call.1} parent=1 // pred_fallthru
      _
    // Predicated region
    $region18: #{tpu_custom_call.1} parent=1 // pred_check
      _
    $region19: #{tpu_custom_call.1} parent=1 // pred_check_branch
      %71 = sbr.rel (0) target = $region21
    $region20: #{tpu_custom_call.1} parent=1 // pred_region
      %73 = vsyncadd [#allocation11], 0
      %s74 = sshll.u32 %s4, 4
      %s75 = int_to_ptr.hbm [resolvable:$true] %s74
      %s76 = sshll.u32 [#allocation10], 4
      %s77 = int_to_ptr.vmem [resolvable:$true] %s76
      %82 = dma.hbm_to_vmem [thread:$0]  %s75, 73728, %s77, [#allocation11], 768, 768, 48
    $region21: #{tpu_custom_call.1} parent=1 // pred_fallthru
      _
    // Predicated region
    $region22: #{tpu_custom_call.1} parent=1 // pred_check
      _
    $region23: #{tpu_custom_call.1} parent=1 // pred_check_branch
      %84 = sbr.rel (0) target = $region25
    $region24: #{tpu_custom_call.1} parent=1 // pred_region
      %86 = vsyncadd [#allocation11], 0
      %s88 = sshll.u32 %s5, 4
      %s89 = int_to_ptr.hbm [resolvable:$true] %s88
      %s90 = sshll.u32 [#allocation12], 4
      %s91 = int_to_ptr.vmem [resolvable:$true] %s90
      %93 = dma.hbm_to_vmem [thread:$0]  %s89, 96, %s91, [#allocation11]
    $region25: #{tpu_custom_call.1} parent=1 // pred_fallthru
      _
    // Predicated region
    $region26: #{tpu_custom_call.1} parent=1 // pred_check
      _
    $region27: #{tpu_custom_call.1} parent=1 // pred_check_branch
      %95 = sbr.rel (0) target = $region29
    $region28: #{tpu_custom_call.1} parent=1 // pred_region
      _
    $region29: #{tpu_custom_call.1} parent=1 // pred_fallthru
      _
    // Predicated region
    $region30: #{tpu_custom_call.1} parent=1 // pred_check
      _
    $region31: #{tpu_custom_call.1} parent=1 // pred_check_branch
      %97 = sbr.rel (0) target = $region33
    $region32: #{tpu_custom_call.1} parent=1 // pred_region
      _
    $region33: #{tpu_custom_call.1} parent=1 // pred_fallthru
      _
    // Predicated region
    $region34: #{tpu_custom_call.1} parent=1 // pred_check
      _
    $region35: #{tpu_custom_call.1} parent=1 // pred_check_branch
      %99 = sbr.rel (0) target = $region37
    $region36: #{tpu_custom_call.1} parent=1 // pred_region
      %101 = vsyncadd [#allocation14], 0
      %s103 = sshll.u32 %s8, 4
      %s104 = int_to_ptr.hbm [resolvable:$true] %s103
      %s105 = sshll.u32 [#allocation13], 4
      %s106 = int_to_ptr.vmem [resolvable:$true] %s105
      %108 = dma.hbm_to_vmem [thread:$0]  %s104, 16, %s106, [#allocation14]
    $region37: #{tpu_custom_call.1} parent=1 // pred_fallthru
      _
    // Predicated region
    $region38: #{tpu_custom_call.1} parent=1 // pred_check
      _
    $region39: #{tpu_custom_call.1} parent=1 // pred_check_branch
      %110 = sbr.rel (0) target = $region41
    $region40: #{tpu_custom_call.1} parent=1 // pred_region
      _
    $region41: #{tpu_custom_call.1} parent=1 // pred_fallthru
      _
    // Predicated region
    $region42: #{tpu_custom_call.1} parent=1 // pred_check
      _
    $region43: #{tpu_custom_call.1} parent=1 // pred_check_branch
      %112 = sbr.rel (0) target = $region45
    $region44: #{tpu_custom_call.1} parent=1 // pred_region
      %114 = vsyncadd [#allocation14], 0
      %s116 = sshll.u32 %s10, 4
      %s117 = int_to_ptr.hbm [resolvable:$true] %s116
      %s118 = sshll.u32 [#allocation15], 4
      %s119 = int_to_ptr.vmem [resolvable:$true] %s118
      %121 = dma.hbm_to_vmem [thread:$0]  %s117, 16, %s119, [#allocation14]
    $region45: #{tpu_custom_call.1} parent=1 // pred_fallthru
      _
    // Predicated region
    $region46: #{tpu_custom_call.1} parent=1 // pred_check
      _
    $region47: #{tpu_custom_call.1} parent=1 // pred_check_branch
      %123 = sbr.rel (0) target = $region49
    $region48: #{tpu_custom_call.1} parent=1 // pred_region
      %125 = vsyncadd [#allocation17], 0
      %s127 = sshll.u32 %s11, 4
      %s128 = int_to_ptr.hbm [resolvable:$true] %s127
      %s129 = sshll.u32 [#allocation16], 4
      %s130 = int_to_ptr.vmem [resolvable:$true] %s129
      %132 = dma.hbm_to_vmem [thread:$0]  %s128, 16, %s130, [#allocation17]
    $region49: #{tpu_custom_call.1} parent=1 // pred_fallthru
      _
    // Predicated region
    $region50: #{tpu_custom_call.1} parent=1 // pred_check
      _
    $region51: #{tpu_custom_call.1} parent=1 // pred_check_branch
      %134 = sbr.rel (0) target = $region53
    $region52: #{tpu_custom_call.1} parent=1 // pred_region
      %136 = dma.done [#allocation5], 16
    $region53: #{tpu_custom_call.1} parent=1 // pred_fallthru
      _
    // Predicated region
    $region54: #{tpu_custom_call.1} parent=1 // pred_check
      _
    $region55: #{tpu_custom_call.1} parent=1 // pred_check_branch
      %138 = sbr.rel (0) target = $region57
    $region56: #{tpu_custom_call.1} parent=1 // pred_region
      %140 = dma.done [#allocation3], 768
    $region57: #{tpu_custom_call.1} parent=1 // pred_fallthru
      _
    // Predicated region
    $region58: #{tpu_custom_call.1} parent=1 // pred_check
      _
    $region59: #{tpu_custom_call.1} parent=1 // pred_check_branch
      %142 = sbr.rel (0) target = $region61
    $region60: #{tpu_custom_call.1} parent=1 // pred_region
      %144 = dma.done [#allocation8], 768
    $region61: #{tpu_custom_call.1} parent=1 // pred_fallthru
      _
    // Predicated region
    $region62: #{tpu_custom_call.1} parent=1 // pred_check
      _
    $region63: #{tpu_custom_call.1} parent=1 // pred_check_branch
      %146 = sbr.rel (0) target = $region65
    $region64: #{tpu_custom_call.1} parent=1 // pred_region
      %148 = dma.done [#allocation8], 768
    $region65: #{tpu_custom_call.1} parent=1 // pred_fallthru
      _
    // Predicated region
    $region66: #{tpu_custom_call.1} parent=1 // pred_check
      _
    $region67: #{tpu_custom_call.1} parent=1 // pred_check_branch
      %150 = sbr.rel (0) target = $region69
    $region68: #{tpu_custom_call.1} parent=1 // pred_region
      %152 = dma.done [#allocation11], 73728
    $region69: #{tpu_custom_call.1} parent=1 // pred_fallthru
      _
    // Predicated region
    $region70: #{tpu_custom_call.1} parent=1 // pred_check
      _
    $region71: #{tpu_custom_call.1} parent=1 // pred_check_branch
      %154 = sbr.rel (0) target = $region73
    $region72: #{tpu_custom_call.1} parent=1 // pred_region
      %156 = dma.done [#allocation11], 96
    $region73: #{tpu_custom_call.1} parent=1 // pred_fallthru
      _
    // Predicated region
    $region74: #{tpu_custom_call.1} parent=1 // pred_check
      _
    $region75: #{tpu_custom_call.1} parent=1 // pred_check_branch
      %158 = sbr.rel (0) target = $region77
    $region76: #{tpu_custom_call.1} parent=1 // pred_region
      %160 = dma.done [#allocation14], 16
    $region77: #{tpu_custom_call.1} parent=1 // pred_fallthru
      _
    // Predicated region
    $region78: #{tpu_custom_call.1} parent=1 // pred_check
      _
    $region79: #{tpu_custom_call.1} parent=1 // pred_check_branch
      %162 = sbr.rel (0) target = $region81
    $region80: #{tpu_custom_call.1} parent=1 // pred_region
      %164 = dma.done [#allocation14], 16
    $region81: #{tpu_custom_call.1} parent=1 // pred_fallthru
      _
    // Predicated region
    $region82: #{tpu_custom_call.1} parent=1 // pred_check
      _
    $region83: #{tpu_custom_call.1} parent=1 // pred_check_branch
      %166 = sbr.rel (0) target = $region85
    $region84: #{tpu_custom_call.1} parent=1 // pred_region
      %168 = dma.done [#allocation17], 16
    $region85: #{tpu_custom_call.1} parent=1 // pred_fallthru
      _
    %169 = sfence
    %v170 = vld [vmem:[#allocation6] sm:$0xff]
    %v171 = vld [vmem:[#allocation6 + $0x8] sm:$0xff]
    %v172 = vld [vmem:[#allocation6 + $0x10] sm:$0xff]
    %v173 = vld [vmem:[#allocation6 + $0x18] sm:$0xff]
    %v174 = vld [vmem:[#allocation6 + $0x20] sm:$0xff]
    %v175 = vld [vmem:[#allocation6 + $0x28] sm:$0xff]
    %v176 = vld [vmem:[#allocation10] sm:$0xff]
    %v177 = vld [vmem:[#allocation10 + $0x8] sm:$0xff]
    %v178 = vld [vmem:[#allocation10 + $0x10] sm:$0xff]
    %v179 = vld [vmem:[#allocation10 + $0x18] sm:$0xff]
    %v180 = vld [vmem:[#allocation10 + $0x20] sm:$0xff]
    %v181 = vld [vmem:[#allocation10 + $0x28] sm:$0xff]
    %v182 = vld [vmem:[#allocation10 + $0x30] sm:$0xff]
    %v183 = vld [vmem:[#allocation10 + $0x38] sm:$0xff]
    %v184 = vld [vmem:[#allocation10 + $0x40] sm:$0xff]
    %v185 = vld [vmem:[#allocation10 + $0x48] sm:$0xff]
    %v186 = vld [vmem:[#allocation10 + $0x50] sm:$0xff]
    %v187 = vld [vmem:[#allocation10 + $0x58] sm:$0xff]
    %v188 = vld [vmem:[#allocation10 + $0x60] sm:$0xff]
    %v189 = vld [vmem:[#allocation10 + $0x68] sm:$0xff]
    %v190 = vld [vmem:[#allocation10 + $0x70] sm:$0xff]
    %v191 = vld [vmem:[#allocation10 + $0x78] sm:$0xff]
    %v192 = vld [vmem:[#allocation10 + $0x80] sm:$0xff]
    %v193 = vld [vmem:[#allocation10 + $0x88] sm:$0xff]
    %v194 = vld [vmem:[#allocation10 + $0x90] sm:$0xff]
    %v195 = vld [vmem:[#allocation10 + $0x98] sm:$0xff]
    %v196 = vld [vmem:[#allocation10 + $0xa0] sm:$0xff]
    %v197 = vld [vmem:[#allocation10 + $0xa8] sm:$0xff]
    %v198 = vld [vmem:[#allocation10 + $0xb0] sm:$0xff]
    %v199 = vld [vmem:[#allocation10 + $0xb8] sm:$0xff]
    %v200 = vld [vmem:[#allocation10 + $0xc0] sm:$0xff]
    %v201 = vld [vmem:[#allocation10 + $0xc8] sm:$0xff]
    %v202 = vld [vmem:[#allocation10 + $0xd0] sm:$0xff]
    %v203 = vld [vmem:[#allocation10 + $0xd8] sm:$0xff]
    %v204 = vld [vmem:[#allocation10 + $0xe0] sm:$0xff]
    %v205 = vld [vmem:[#allocation10 + $0xe8] sm:$0xff]
    %v206 = vld [vmem:[#allocation10 + $0xf0] sm:$0xff]
    %v207 = vld [vmem:[#allocation10 + $0xf8] sm:$0xff]
    %v208 = vld [vmem:[#allocation10 + $0x100] sm:$0xff]
    %v209 = vld [vmem:[#allocation10 + $0x108] sm:$0xff]
    %v210 = vld [vmem:[#allocation10 + $0x110] sm:$0xff]
    %v211 = vld [vmem:[#allocation10 + $0x118] sm:$0xff]
    %v212 = vld [vmem:[#allocation10 + $0x120] sm:$0xff]
    %v213 = vld [vmem:[#allocation10 + $0x128] sm:$0xff]
    %v214 = vld [vmem:[#allocation10 + $0x130] sm:$0xff]
    %v215 = vld [vmem:[#allocation10 + $0x138] sm:$0xff]
    %v216 = vld [vmem:[#allocation10 + $0x140] sm:$0xff]
    %v217 = vld [vmem:[#allocation10 + $0x148] sm:$0xff]
    %v218 = vld [vmem:[#allocation10 + $0x150] sm:$0xff]
    %v219 = vld [vmem:[#allocation10 + $0x158] sm:$0xff]
    %v220 = vld [vmem:[#allocation10 + $0x160] sm:$0xff]
    %v221 = vld [vmem:[#allocation10 + $0x168] sm:$0xff]
    %v222 = vld [vmem:[#allocation10 + $0x170] sm:$0xff]
    %v223 = vld [vmem:[#allocation10 + $0x178] sm:$0xff]
    %v224 = vld [vmem:[#allocation10 + $0x180] sm:$0xff]
    %v225 = vld [vmem:[#allocation10 + $0x188] sm:$0xff]
    %v226 = vld [vmem:[#allocation10 + $0x190] sm:$0xff]
    %v227 = vld [vmem:[#allocation10 + $0x198] sm:$0xff]
    %v228 = vld [vmem:[#allocation10 + $0x1a0] sm:$0xff]
    %v229 = vld [vmem:[#allocation10 + $0x1a8] sm:$0xff]
    %v230 = vld [vmem:[#allocation10 + $0x1b0] sm:$0xff]
    %v231 = vld [vmem:[#allocation10 + $0x1b8] sm:$0xff]
    %v232 = vld [vmem:[#allocation10 + $0x1c0] sm:$0xff]
    %v233 = vld [vmem:[#allocation10 + $0x1c8] sm:$0xff]
    %v234 = vld [vmem:[#allocation10 + $0x1d0] sm:$0xff]
    %v235 = vld [vmem:[#allocation10 + $0x1d8] sm:$0xff]
    %v236 = vld [vmem:[#allocation10 + $0x1e0] sm:$0xff]
    %v237 = vld [vmem:[#allocation10 + $0x1e8] sm:$0xff]
    %v238 = vld [vmem:[#allocation10 + $0x1f0] sm:$0xff]
    %v239 = vld [vmem:[#allocation10 + $0x1f8] sm:$0xff]
    %v240 = vld [vmem:[#allocation10 + $0x200] sm:$0xff]
    %v241 = vld [vmem:[#allocation10 + $0x208] sm:$0xff]
    %v242 = vld [vmem:[#allocation10 + $0x210] sm:$0xff]
    %v243 = vld [vmem:[#allocation10 + $0x218] sm:$0xff]
    %v244 = vld [vmem:[#allocation10 + $0x220] sm:$0xff]
    %v245 = vld [vmem:[#allocation10 + $0x228] sm:$0xff]
    %v246 = vld [vmem:[#allocation10 + $0x230] sm:$0xff]
    %v247 = vld [vmem:[#allocation10 + $0x238] sm:$0xff]
    %v248 = vld [vmem:[#allocation10 + $0x240] sm:$0xff]
    %v249 = vld [vmem:[#allocation10 + $0x248] sm:$0xff]
    %v250 = vld [vmem:[#allocation10 + $0x250] sm:$0xff]
    %v251 = vld [vmem:[#allocation10 + $0x258] sm:$0xff]
    %v252 = vld [vmem:[#allocation10 + $0x260] sm:$0xff]
    %v253 = vld [vmem:[#allocation10 + $0x268] sm:$0xff]
    %v254 = vld [vmem:[#allocation10 + $0x270] sm:$0xff]
    %v255 = vld [vmem:[#allocation10 + $0x278] sm:$0xff]
    %v256 = vld [vmem:[#allocation10 + $0x280] sm:$0xff]
    %v257 = vld [vmem:[#allocation10 + $0x288] sm:$0xff]
    %v258 = vld [vmem:[#allocation10 + $0x290] sm:$0xff]
    %v259 = vld [vmem:[#allocation10 + $0x298] sm:$0xff]
    %v260 = vld [vmem:[#allocation10 + $0x2a0] sm:$0xff]
    %v261 = vld [vmem:[#allocation10 + $0x2a8] sm:$0xff]
    %v262 = vld [vmem:[#allocation10 + $0x2b0] sm:$0xff]
    %v263 = vld [vmem:[#allocation10 + $0x2b8] sm:$0xff]
    %v264 = vld [vmem:[#allocation10 + $0x2c0] sm:$0xff]
    %v265 = vld [vmem:[#allocation10 + $0x2c8] sm:$0xff]
    %v266 = vld [vmem:[#allocation10 + $0x2d0] sm:$0xff]
    %v267 = vld [vmem:[#allocation10 + $0x2d8] sm:$0xff]
    %v268 = vld [vmem:[#allocation10 + $0x2e0] sm:$0xff]
    %v269 = vld [vmem:[#allocation10 + $0x2e8] sm:$0xff]
    %v270 = vld [vmem:[#allocation10 + $0x2f0] sm:$0xff]
    %v271 = vld [vmem:[#allocation10 + $0x2f8] sm:$0xff]
    %v272 = vld [vmem:[#allocation10 + $0x300] sm:$0xff]
    %v273 = vld [vmem:[#allocation10 + $0x308] sm:$0xff]
    %v274 = vld [vmem:[#allocation10 + $0x310] sm:$0xff]
    %v275 = vld [vmem:[#allocation10 + $0x318] sm:$0xff]
    %v276 = vld [vmem:[#allocation10 + $0x320] sm:$0xff]
    %v277 = vld [vmem:[#allocation10 + $0x328] sm:$0xff]
    %v278 = vld [vmem:[#allocation10 + $0x330] sm:$0xff]
    %v279 = vld [vmem:[#allocation10 + $0x338] sm:$0xff]
    %v280 = vld [vmem:[#allocation10 + $0x340] sm:$0xff]
    %v281 = vld [vmem:[#allocation10 + $0x348] sm:$0xff]
    %v282 = vld [vmem:[#allocation10 + $0x350] sm:$0xff]
    %v283 = vld [vmem:[#allocation10 + $0x358] sm:$0xff]
    %v284 = vld [vmem:[#allocation10 + $0x360] sm:$0xff]
    %v285 = vld [vmem:[#allocation10 + $0x368] sm:$0xff]
    %v286 = vld [vmem:[#allocation10 + $0x370] sm:$0xff]
    %v287 = vld [vmem:[#allocation10 + $0x378] sm:$0xff]
    %v288 = vld [vmem:[#allocation10 + $0x380] sm:$0xff]
    %v289 = vld [vmem:[#allocation10 + $0x388] sm:$0xff]
    %v290 = vld [vmem:[#allocation10 + $0x390] sm:$0xff]
    %v291 = vld [vmem:[#allocation10 + $0x398] sm:$0xff]
    %v292 = vld [vmem:[#allocation10 + $0x3a0] sm:$0xff]
    %v293 = vld [vmem:[#allocation10 + $0x3a8] sm:$0xff]
    %v294 = vld [vmem:[#allocation10 + $0x3b0] sm:$0xff]
    %v295 = vld [vmem:[#allocation10 + $0x3b8] sm:$0xff]
    %v296 = vld [vmem:[#allocation10 + $0x3c0] sm:$0xff]
    %v297 = vld [vmem:[#allocation10 + $0x3c8] sm:$0xff]
    %v298 = vld [vmem:[#allocation10 + $0x3d0] sm:$0xff]
    %v299 = vld [vmem:[#allocation10 + $0x3d8] sm:$0xff]
    %v300 = vld [vmem:[#allocation10 + $0x3e0] sm:$0xff]
    %v301 = vld [vmem:[#allocation10 + $0x3e8] sm:$0xff]
    %v302 = vld [vmem:[#allocation10 + $0x3f0] sm:$0xff]
    %v303 = vld [vmem:[#allocation10 + $0x3f8] sm:$0xff]
    %v304 = vld [vmem:[#allocation10 + $0x400] sm:$0xff]
    %v305 = vld [vmem:[#allocation10 + $0x408] sm:$0xff]
    %v306 = vld [vmem:[#allocation10 + $0x410] sm:$0xff]
    %v307 = vld [vmem:[#allocation10 + $0x418] sm:$0xff]
    %v308 = vld [vmem:[#allocation10 + $0x420] sm:$0xff]
    %v309 = vld [vmem:[#allocation10 + $0x428] sm:$0xff]
    %v310 = vld [vmem:[#allocation10 + $0x430] sm:$0xff]
    %v311 = vld [vmem:[#allocation10 + $0x438] sm:$0xff]
    %v312 = vld [vmem:[#allocation10 + $0x440] sm:$0xff]
    %v313 = vld [vmem:[#allocation10 + $0x448] sm:$0xff]
    %v314 = vld [vmem:[#allocation10 + $0x450] sm:$0xff]
    %v315 = vld [vmem:[#allocation10 + $0x458] sm:$0xff]
    %v316 = vld [vmem:[#allocation10 + $0x460] sm:$0xff]
    %v317 = vld [vmem:[#allocation10 + $0x468] sm:$0xff]
    %v318 = vld [vmem:[#allocation10 + $0x470] sm:$0xff]
    %v319 = vld [vmem:[#allocation10 + $0x478] sm:$0xff]
    %v320 = vld [vmem:[#allocation10 + $0x480] sm:$0xff]
    %v321 = vld [vmem:[#allocation10 + $0x488] sm:$0xff]
    %v322 = vld [vmem:[#allocation10 + $0x490] sm:$0xff]
    %v323 = vld [vmem:[#allocation10 + $0x498] sm:$0xff]
    %v324 = vld [vmem:[#allocation10 + $0x4a0] sm:$0xff]
    %v325 = vld [vmem:[#allocation10 + $0x4a8] sm:$0xff]
    %v326 = vld [vmem:[#allocation10 + $0x4b0] sm:$0xff]
    %v327 = vld [vmem:[#allocation10 + $0x4b8] sm:$0xff]
    %v328 = vld [vmem:[#allocation10 + $0x4c0] sm:$0xff]
    %v329 = vld [vmem:[#allocation10 + $0x4c8] sm:$0xff]
    %v330 = vld [vmem:[#allocation10 + $0x4d0] sm:$0xff]
    %v331 = vld [vmem:[#allocation10 + $0x4d8] sm:$0xff]
    %v332 = vld [vmem:[#allocation10 + $0x4e0] sm:$0xff]
    %v333 = vld [vmem:[#allocation10 + $0x4e8] sm:$0xff]
    %v334 = vld [vmem:[#allocation10 + $0x4f0] sm:$0xff]
    %v335 = vld [vmem:[#allocation10 + $0x4f8] sm:$0xff]
    %v336 = vld [vmem:[#allocation10 + $0x500] sm:$0xff]
    %v337 = vld [vmem:[#allocation10 + $0x508] sm:$0xff]
    %v338 = vld [vmem:[#allocation10 + $0x510] sm:$0xff]
    %v339 = vld [vmem:[#allocation10 + $0x518] sm:$0xff]
    %v340 = vld [vmem:[#allocation10 + $0x520] sm:$0xff]
    %v341 = vld [vmem:[#allocation10 + $0x528] sm:$0xff]
    %v342 = vld [vmem:[#allocation10 + $0x530] sm:$0xff]
    %v343 = vld [vmem:[#allocation10 + $0x538] sm:$0xff]
    %v344 = vld [vmem:[#allocation10 + $0x540] sm:$0xff]
    %v345 = vld [vmem:[#allocation10 + $0x548] sm:$0xff]
    %v346 = vld [vmem:[#allocation10 + $0x550] sm:$0xff]
    %v347 = vld [vmem:[#allocation10 + $0x558] sm:$0xff]
    %v348 = vld [vmem:[#allocation10 + $0x560] sm:$0xff]
    %v349 = vld [vmem:[#allocation10 + $0x568] sm:$0xff]
    %v350 = vld [vmem:[#allocation10 + $0x570] sm:$0xff]
    %v351 = vld [vmem:[#allocation10 + $0x578] sm:$0xff]
    %v352 = vld [vmem:[#allocation10 + $0x580] sm:$0xff]
    %v353 = vld [vmem:[#allocation10 + $0x588] sm:$0xff]
    %v354 = vld [vmem:[#allocation10 + $0x590] sm:$0xff]
    %v355 = vld [vmem:[#allocation10 + $0x598] sm:$0xff]
    %v356 = vld [vmem:[#allocation10 + $0x5a0] sm:$0xff]
    %v357 = vld [vmem:[#allocation10 + $0x5a8] sm:$0xff]
    %v358 = vld [vmem:[#allocation10 + $0x5b0] sm:$0xff]
    %v359 = vld [vmem:[#allocation10 + $0x5b8] sm:$0xff]
    %v360 = vld [vmem:[#allocation10 + $0x5c0] sm:$0xff]
    %v361 = vld [vmem:[#allocation10 + $0x5c8] sm:$0xff]
    %v362 = vld [vmem:[#allocation10 + $0x5d0] sm:$0xff]
    %v363 = vld [vmem:[#allocation10 + $0x5d8] sm:$0xff]
    %v364 = vld [vmem:[#allocation10 + $0x5e0] sm:$0xff]
    %v365 = vld [vmem:[#allocation10 + $0x5e8] sm:$0xff]
    %v366 = vld [vmem:[#allocation10 + $0x5f0] sm:$0xff]
    %v367 = vld [vmem:[#allocation10 + $0x5f8] sm:$0xff]
    %v368 = vld [vmem:[#allocation10 + $0x600] sm:$0xff]
    %v369 = vld [vmem:[#allocation10 + $0x608] sm:$0xff]
    %v370 = vld [vmem:[#allocation10 + $0x610] sm:$0xff]
    %v371 = vld [vmem:[#allocation10 + $0x618] sm:$0xff]
    %v372 = vld [vmem:[#allocation10 + $0x620] sm:$0xff]
    %v373 = vld [vmem:[#allocation10 + $0x628] sm:$0xff]
    %v374 = vld [vmem:[#allocation10 + $0x630] sm:$0xff]
    %v375 = vld [vmem:[#allocation10 + $0x638] sm:$0xff]
    %v376 = vld [vmem:[#allocation10 + $0x640] sm:$0xff]
    %v377 = vld [vmem:[#allocation10 + $0x648] sm:$0xff]
    %v378 = vld [vmem:[#allocation10 + $0x650] sm:$0xff]
    %v379 = vld [vmem:[#allocation10 + $0x658] sm:$0xff]
    %v380 = vld [vmem:[#allocation10 + $0x660] sm:$0xff]
    %v381 = vld [vmem:[#allocation10 + $0x668] sm:$0xff]
    %v382 = vld [vmem:[#allocation10 + $0x670] sm:$0xff]
    %v383 = vld [vmem:[#allocation10 + $0x678] sm:$0xff]
    %v384 = vld [vmem:[#allocation10 + $0x680] sm:$0xff]
    %v385 = vld [vmem:[#allocation10 + $0x688] sm:$0xff]
    %v386 = vld [vmem:[#allocation10 + $0x690] sm:$0xff]
    %v387 = vld [vmem:[#allocation10 + $0x698] sm:$0xff]
    %v388 = vld [vmem:[#allocation10 + $0x6a0] sm:$0xff]
    %v389 = vld [vmem:[#allocation10 + $0x6a8] sm:$0xff]
    %v390 = vld [vmem:[#allocation10 + $0x6b0] sm:$0xff]
    %v391 = vld [vmem:[#allocation10 + $0x6b8] sm:$0xff]
    %v392 = vld [vmem:[#allocation10 + $0x6c0] sm:$0xff]
    %v393 = vld [vmem:[#allocation10 + $0x6c8] sm:$0xff]
    %v394 = vld [vmem:[#allocation10 + $0x6d0] sm:$0xff]
    %v395 = vld [vmem:[#allocation10 + $0x6d8] sm:$0xff]
    %v396 = vld [vmem:[#allocation10 + $0x6e0] sm:$0xff]
    %v397 = vld [vmem:[#allocation10 + $0x6e8] sm:$0xff]
    %v398 = vld [vmem:[#allocation10 + $0x6f0] sm:$0xff]
    %v399 = vld [vmem:[#allocation10 + $0x6f8] sm:$0xff]
    %v400 = vld [vmem:[#allocation10 + $0x700] sm:$0xff]
    %v401 = vld [vmem:[#allocation10 + $0x708] sm:$0xff]
    %v402 = vld [vmem:[#allocation10 + $0x710] sm:$0xff]
    %v403 = vld [vmem:[#allocation10 + $0x718] sm:$0xff]
    %v404 = vld [vmem:[#allocation10 + $0x720] sm:$0xff]
    %v405 = vld [vmem:[#allocation10 + $0x728] sm:$0xff]
    %v406 = vld [vmem:[#allocation10 + $0x730] sm:$0xff]
    %v407 = vld [vmem:[#allocation10 + $0x738] sm:$0xff]
    %v408 = vld [vmem:[#allocation10 + $0x740] sm:$0xff]
    %v409 = vld [vmem:[#allocation10 + $0x748] sm:$0xff]
    %v410 = vld [vmem:[#allocation10 + $0x750] sm:$0xff]
    %v411 = vld [vmem:[#allocation10 + $0x758] sm:$0xff]
    %v412 = vld [vmem:[#allocation10 + $0x760] sm:$0xff]
    %v413 = vld [vmem:[#allocation10 + $0x768] sm:$0xff]
    %v414 = vld [vmem:[#allocation10 + $0x770] sm:$0xff]
    %v415 = vld [vmem:[#allocation10 + $0x778] sm:$0xff]
    %v416 = vld [vmem:[#allocation10 + $0x780] sm:$0xff]
    %v417 = vld [vmem:[#allocation10 + $0x788] sm:$0xff]
    %v418 = vld [vmem:[#allocation10 + $0x790] sm:$0xff]
    %v419 = vld [vmem:[#allocation10 + $0x798] sm:$0xff]
    %v420 = vld [vmem:[#allocation10 + $0x7a0] sm:$0xff]
    %v421 = vld [vmem:[#allocation10 + $0x7a8] sm:$0xff]
    %v422 = vld [vmem:[#allocation10 + $0x7b0] sm:$0xff]
    %v423 = vld [vmem:[#allocation10 + $0x7b8] sm:$0xff]
    %v424 = vld [vmem:[#allocation10 + $0x7c0] sm:$0xff]
    %v425 = vld [vmem:[#allocation10 + $0x7c8] sm:$0xff]
    %v426 = vld [vmem:[#allocation10 + $0x7d0] sm:$0xff]
    %v427 = vld [vmem:[#allocation10 + $0x7d8] sm:$0xff]
    %v428 = vld [vmem:[#allocation10 + $0x7e0] sm:$0xff]
    %v429 = vld [vmem:[#allocation10 + $0x7e8] sm:$0xff]
    %v430 = vld [vmem:[#allocation10 + $0x7f0] sm:$0xff]
    %v431 = vld [vmem:[#allocation10 + $0x7f8] sm:$0xff]
    %v432 = vld [vmem:[#allocation10 + $0x800] sm:$0xff]
    %v433 = vld [vmem:[#allocation10 + $0x808] sm:$0xff]
    %v434 = vld [vmem:[#allocation10 + $0x810] sm:$0xff]
    %v435 = vld [vmem:[#allocation10 + $0x818] sm:$0xff]
    %v436 = vld [vmem:[#allocation10 + $0x820] sm:$0xff]
    %v437 = vld [vmem:[#allocation10 + $0x828] sm:$0xff]
    %v438 = vld [vmem:[#allocation10 + $0x830] sm:$0xff]
    %v439 = vld [vmem:[#allocation10 + $0x838] sm:$0xff]
    %v440 = vld [vmem:[#allocation10 + $0x840] sm:$0xff]
    %v441 = vld [vmem:[#allocation10 + $0x848] sm:$0xff]
    %v442 = vld [vmem:[#allocation10 + $0x850] sm:$0xff]
    %v443 = vld [vmem:[#allocation10 + $0x858] sm:$0xff]
    %v444 = vld [vmem:[#allocation10 + $0x860] sm:$0xff]
    %v445 = vld [vmem:[#allocation10 + $0x868] sm:$0xff]
    %v446 = vld [vmem:[#allocation10 + $0x870] sm:$0xff]
    %v447 = vld [vmem:[#allocation10 + $0x878] sm:$0xff]
    %v448 = vld [vmem:[#allocation10 + $0x880] sm:$0xff]
    %v449 = vld [vmem:[#allocation10 + $0x888] sm:$0xff]
    %v450 = vld [vmem:[#allocation10 + $0x890] sm:$0xff]
    %v451 = vld [vmem:[#allocation10 + $0x898] sm:$0xff]
    %v452 = vld [vmem:[#allocation10 + $0x8a0] sm:$0xff]
    %v453 = vld [vmem:[#allocation10 + $0x8a8] sm:$0xff]
    %v454 = vld [vmem:[#allocation10 + $0x8b0] sm:$0xff]
    %v455 = vld [vmem:[#allocation10 + $0x8b8] sm:$0xff]
    %v456 = vld [vmem:[#allocation10 + $0x8c0] sm:$0xff]
    %v457 = vld [vmem:[#allocation10 + $0x8c8] sm:$0xff]
    %v458 = vld [vmem:[#allocation10 + $0x8d0] sm:$0xff]
    %v459 = vld [vmem:[#allocation10 + $0x8d8] sm:$0xff]
    %v460 = vld [vmem:[#allocation10 + $0x8e0] sm:$0xff]
    %v461 = vld [vmem:[#allocation10 + $0x8e8] sm:$0xff]
    %v462 = vld [vmem:[#allocation10 + $0x8f0] sm:$0xff]
    %v463 = vld [vmem:[#allocation10 + $0x8f8] sm:$0xff]
    %v464 = vld [vmem:[#allocation10 + $0x900] sm:$0xff]
    %v465 = vld [vmem:[#allocation10 + $0x908] sm:$0xff]
    %v466 = vld [vmem:[#allocation10 + $0x910] sm:$0xff]
    %v467 = vld [vmem:[#allocation10 + $0x918] sm:$0xff]
    %v468 = vld [vmem:[#allocation10 + $0x920] sm:$0xff]
    %v469 = vld [vmem:[#allocation10 + $0x928] sm:$0xff]
    %v470 = vld [vmem:[#allocation10 + $0x930] sm:$0xff]
    %v471 = vld [vmem:[#allocation10 + $0x938] sm:$0xff]
    %v472 = vld [vmem:[#allocation10 + $0x940] sm:$0xff]
    %v473 = vld [vmem:[#allocation10 + $0x948] sm:$0xff]
    %v474 = vld [vmem:[#allocation10 + $0x950] sm:$0xff]
    %v475 = vld [vmem:[#allocation10 + $0x958] sm:$0xff]
    %v476 = vld [vmem:[#allocation10 + $0x960] sm:$0xff]
    %v477 = vld [vmem:[#allocation10 + $0x968] sm:$0xff]
    %v478 = vld [vmem:[#allocation10 + $0x970] sm:$0xff]
    %v479 = vld [vmem:[#allocation10 + $0x978] sm:$0xff]
    %v480 = vld [vmem:[#allocation10 + $0x980] sm:$0xff]
    %v481 = vld [vmem:[#allocation10 + $0x988] sm:$0xff]
    %v482 = vld [vmem:[#allocation10 + $0x990] sm:$0xff]
    %v483 = vld [vmem:[#allocation10 + $0x998] sm:$0xff]
    %v484 = vld [vmem:[#allocation10 + $0x9a0] sm:$0xff]
    %v485 = vld [vmem:[#allocation10 + $0x9a8] sm:$0xff]
    %v486 = vld [vmem:[#allocation10 + $0x9b0] sm:$0xff]
    %v487 = vld [vmem:[#allocation10 + $0x9b8] sm:$0xff]
    %v488 = vld [vmem:[#allocation10 + $0x9c0] sm:$0xff]
    %v489 = vld [vmem:[#allocation10 + $0x9c8] sm:$0xff]
    %v490 = vld [vmem:[#allocation10 + $0x9d0] sm:$0xff]
    %v491 = vld [vmem:[#allocation10 + $0x9d8] sm:$0xff]
    %v492 = vld [vmem:[#allocation10 + $0x9e0] sm:$0xff]
    %v493 = vld [vmem:[#allocation10 + $0x9e8] sm:$0xff]
    %v494 = vld [vmem:[#allocation10 + $0x9f0] sm:$0xff]
    %v495 = vld [vmem:[#allocation10 + $0x9f8] sm:$0xff]
    %v496 = vld [vmem:[#allocation10 + $0xa00] sm:$0xff]
    %v497 = vld [vmem:[#allocation10 + $0xa08] sm:$0xff]
    %v498 = vld [vmem:[#allocation10 + $0xa10] sm:$0xff]
    %v499 = vld [vmem:[#allocation10 + $0xa18] sm:$0xff]
    %v500 = vld [vmem:[#allocation10 + $0xa20] sm:$0xff]
    %v501 = vld [vmem:[#allocation10 + $0xa28] sm:$0xff]
    %v502 = vld [vmem:[#allocation10 + $0xa30] sm:$0xff]
    %v503 = vld [vmem:[#allocation10 + $0xa38] sm:$0xff]
    %v504 = vld [vmem:[#allocation10 + $0xa40] sm:$0xff]
    %v505 = vld [vmem:[#allocation10 + $0xa48] sm:$0xff]
    %v506 = vld [vmem:[#allocation10 + $0xa50] sm:$0xff]
    %v507 = vld [vmem:[#allocation10 + $0xa58] sm:$0xff]
    %v508 = vld [vmem:[#allocation10 + $0xa60] sm:$0xff]
    %v509 = vld [vmem:[#allocation10 + $0xa68] sm:$0xff]
    %v510 = vld [vmem:[#allocation10 + $0xa70] sm:$0xff]
    %v511 = vld [vmem:[#allocation10 + $0xa78] sm:$0xff]
    %v512 = vld [vmem:[#allocation10 + $0xa80] sm:$0xff]
    %v513 = vld [vmem:[#allocation10 + $0xa88] sm:$0xff]
    %v514 = vld [vmem:[#allocation10 + $0xa90] sm:$0xff]
    %v515 = vld [vmem:[#allocation10 + $0xa98] sm:$0xff]
    %v516 = vld [vmem:[#allocation10 + $0xaa0] sm:$0xff]
    %v517 = vld [vmem:[#allocation10 + $0xaa8] sm:$0xff]
    %v518 = vld [vmem:[#allocation10 + $0xab0] sm:$0xff]
    %v519 = vld [vmem:[#allocation10 + $0xab8] sm:$0xff]
    %v520 = vld [vmem:[#allocation10 + $0xac0] sm:$0xff]
    %v521 = vld [vmem:[#allocation10 + $0xac8] sm:$0xff]
    %v522 = vld [vmem:[#allocation10 + $0xad0] sm:$0xff]
    %v523 = vld [vmem:[#allocation10 + $0xad8] sm:$0xff]
    %v524 = vld [vmem:[#allocation10 + $0xae0] sm:$0xff]
    %v525 = vld [vmem:[#allocation10 + $0xae8] sm:$0xff]
    %v526 = vld [vmem:[#allocation10 + $0xaf0] sm:$0xff]
    %v527 = vld [vmem:[#allocation10 + $0xaf8] sm:$0xff]
    %v528 = vld [vmem:[#allocation10 + $0xb00] sm:$0xff]
    %v529 = vld [vmem:[#allocation10 + $0xb08] sm:$0xff]
    %v530 = vld [vmem:[#allocation10 + $0xb10] sm:$0xff]
    %v531 = vld [vmem:[#allocation10 + $0xb18] sm:$0xff]
    %v532 = vld [vmem:[#allocation10 + $0xb20] sm:$0xff]
    %v533 = vld [vmem:[#allocation10 + $0xb28] sm:$0xff]
    %v534 = vld [vmem:[#allocation10 + $0xb30] sm:$0xff]
    %v535 = vld [vmem:[#allocation10 + $0xb38] sm:$0xff]
    %v536 = vld [vmem:[#allocation10 + $0xb40] sm:$0xff]
    %v537 = vld [vmem:[#allocation10 + $0xb48] sm:$0xff]
    %v538 = vld [vmem:[#allocation10 + $0xb50] sm:$0xff]
    %v539 = vld [vmem:[#allocation10 + $0xb58] sm:$0xff]
    %v540 = vld [vmem:[#allocation10 + $0xb60] sm:$0xff]
    %v541 = vld [vmem:[#allocation10 + $0xb68] sm:$0xff]
    %v542 = vld [vmem:[#allocation10 + $0xb70] sm:$0xff]
    %v543 = vld [vmem:[#allocation10 + $0xb78] sm:$0xff]
    %v544 = vld [vmem:[#allocation10 + $0xb80] sm:$0xff]
    %v545 = vld [vmem:[#allocation10 + $0xb88] sm:$0xff]
    %v546 = vld [vmem:[#allocation10 + $0xb90] sm:$0xff]
    %v547 = vld [vmem:[#allocation10 + $0xb98] sm:$0xff]
    %v548 = vld [vmem:[#allocation10 + $0xba0] sm:$0xff]
    %v549 = vld [vmem:[#allocation10 + $0xba8] sm:$0xff]
    %v550 = vld [vmem:[#allocation10 + $0xbb0] sm:$0xff]
    %v551 = vld [vmem:[#allocation10 + $0xbb8] sm:$0xff]
    %v552 = vld [vmem:[#allocation10 + $0xbc0] sm:$0xff]
    %v553 = vld [vmem:[#allocation10 + $0xbc8] sm:$0xff]
    %v554 = vld [vmem:[#allocation10 + $0xbd0] sm:$0xff]
    %v555 = vld [vmem:[#allocation10 + $0xbd8] sm:$0xff]
    %v556 = vld [vmem:[#allocation10 + $0xbe0] sm:$0xff]
    %v557 = vld [vmem:[#allocation10 + $0xbe8] sm:$0xff]
    %v558 = vld [vmem:[#allocation10 + $0xbf0] sm:$0xff]
    %v559 = vld [vmem:[#allocation10 + $0xbf8] sm:$0xff]
    %v560 = vld [vmem:[#allocation10 + $0xc00] sm:$0xff]
    %v561 = vld [vmem:[#allocation10 + $0xc08] sm:$0xff]
    %v562 = vld [vmem:[#allocation10 + $0xc10] sm:$0xff]
    %v563 = vld [vmem:[#allocation10 + $0xc18] sm:$0xff]
    %v564 = vld [vmem:[#allocation10 + $0xc20] sm:$0xff]
    %v565 = vld [vmem:[#allocation10 + $0xc28] sm:$0xff]
    %v566 = vld [vmem:[#allocation10 + $0xc30] sm:$0xff]
    %v567 = vld [vmem:[#allocation10 + $0xc38] sm:$0xff]
    %v568 = vld [vmem:[#allocation10 + $0xc40] sm:$0xff]
    %v569 = vld [vmem:[#allocation10 + $0xc48] sm:$0xff]
    %v570 = vld [vmem:[#allocation10 + $0xc50] sm:$0xff]
    %v571 = vld [vmem:[#allocation10 + $0xc58] sm:$0xff]
    %v572 = vld [vmem:[#allocation10 + $0xc60] sm:$0xff]
    %v573 = vld [vmem:[#allocation10 + $0xc68] sm:$0xff]
    %v574 = vld [vmem:[#allocation10 + $0xc70] sm:$0xff]
    %v575 = vld [vmem:[#allocation10 + $0xc78] sm:$0xff]
    %v576 = vld [vmem:[#allocation10 + $0xc80] sm:$0xff]
    %v577 = vld [vmem:[#allocation10 + $0xc88] sm:$0xff]
    %v578 = vld [vmem:[#allocation10 + $0xc90] sm:$0xff]
    %v579 = vld [vmem:[#allocation10 + $0xc98] sm:$0xff]
    %v580 = vld [vmem:[#allocation10 + $0xca0] sm:$0xff]
    %v581 = vld [vmem:[#allocation10 + $0xca8] sm:$0xff]
    %v582 = vld [vmem:[#allocation10 + $0xcb0] sm:$0xff]
    %v583 = vld [vmem:[#allocation10 + $0xcb8] sm:$0xff]
    %v584 = vld [vmem:[#allocation10 + $0xcc0] sm:$0xff]
    %v585 = vld [vmem:[#allocation10 + $0xcc8] sm:$0xff]
    %v586 = vld [vmem:[#allocation10 + $0xcd0] sm:$0xff]
    %v587 = vld [vmem:[#allocation10 + $0xcd8] sm:$0xff]
    %v588 = vld [vmem:[#allocation10 + $0xce0] sm:$0xff]
    %v589 = vld [vmem:[#allocation10 + $0xce8] sm:$0xff]
    %v590 = vld [vmem:[#allocation10 + $0xcf0] sm:$0xff]
    %v591 = vld [vmem:[#allocation10 + $0xcf8] sm:$0xff]
    %v592 = vld [vmem:[#allocation10 + $0xd00] sm:$0xff]
    %v593 = vld [vmem:[#allocation10 + $0xd08] sm:$0xff]
    %v594 = vld [vmem:[#allocation10 + $0xd10] sm:$0xff]
    %v595 = vld [vmem:[#allocation10 + $0xd18] sm:$0xff]
    %v596 = vld [vmem:[#allocation10 + $0xd20] sm:$0xff]
    %v597 = vld [vmem:[#allocation10 + $0xd28] sm:$0xff]
    %v598 = vld [vmem:[#allocation10 + $0xd30] sm:$0xff]
    %v599 = vld [vmem:[#allocation10 + $0xd38] sm:$0xff]
    %v600 = vld [vmem:[#allocation10 + $0xd40] sm:$0xff]
    %v601 = vld [vmem:[#allocation10 + $0xd48] sm:$0xff]
    %v602 = vld [vmem:[#allocation10 + $0xd50] sm:$0xff]
    %v603 = vld [vmem:[#allocation10 + $0xd58] sm:$0xff]
    %v604 = vld [vmem:[#allocation10 + $0xd60] sm:$0xff]
    %v605 = vld [vmem:[#allocation10 + $0xd68] sm:$0xff]
    %v606 = vld [vmem:[#allocation10 + $0xd70] sm:$0xff]
    %v607 = vld [vmem:[#allocation10 + $0xd78] sm:$0xff]
    %v608 = vld [vmem:[#allocation10 + $0xd80] sm:$0xff]
    %v609 = vld [vmem:[#allocation10 + $0xd88] sm:$0xff]
    %v610 = vld [vmem:[#allocation10 + $0xd90] sm:$0xff]
    %v611 = vld [vmem:[#allocation10 + $0xd98] sm:$0xff]
    %v612 = vld [vmem:[#allocation10 + $0xda0] sm:$0xff]
    %v613 = vld [vmem:[#allocation10 + $0xda8] sm:$0xff]
    %v614 = vld [vmem:[#allocation10 + $0xdb0] sm:$0xff]
    %v615 = vld [vmem:[#allocation10 + $0xdb8] sm:$0xff]
    %v616 = vld [vmem:[#allocation10 + $0xdc0] sm:$0xff]
    %v617 = vld [vmem:[#allocation10 + $0xdc8] sm:$0xff]
    %v618 = vld [vmem:[#allocation10 + $0xdd0] sm:$0xff]
    %v619 = vld [vmem:[#allocation10 + $0xdd8] sm:$0xff]
    %v620 = vld [vmem:[#allocation10 + $0xde0] sm:$0xff]
    %v621 = vld [vmem:[#allocation10 + $0xde8] sm:$0xff]
    %v622 = vld [vmem:[#allocation10 + $0xdf0] sm:$0xff]
    %v623 = vld [vmem:[#allocation10 + $0xdf8] sm:$0xff]
    %v624 = vld [vmem:[#allocation10 + $0xe00] sm:$0xff]
    %v625 = vld [vmem:[#allocation10 + $0xe08] sm:$0xff]
    %v626 = vld [vmem:[#allocation10 + $0xe10] sm:$0xff]
    %v627 = vld [vmem:[#allocation10 + $0xe18] sm:$0xff]
    %v628 = vld [vmem:[#allocation10 + $0xe20] sm:$0xff]
    %v629 = vld [vmem:[#allocation10 + $0xe28] sm:$0xff]
    %v630 = vld [vmem:[#allocation10 + $0xe30] sm:$0xff]
    %v631 = vld [vmem:[#allocation10 + $0xe38] sm:$0xff]
    %v632 = vld [vmem:[#allocation10 + $0xe40] sm:$0xff]
    %v633 = vld [vmem:[#allocation10 + $0xe48] sm:$0xff]
    %v634 = vld [vmem:[#allocation10 + $0xe50] sm:$0xff]
    %v635 = vld [vmem:[#allocation10 + $0xe58] sm:$0xff]
    %v636 = vld [vmem:[#allocation10 + $0xe60] sm:$0xff]
    %v637 = vld [vmem:[#allocation10 + $0xe68] sm:$0xff]
    %v638 = vld [vmem:[#allocation10 + $0xe70] sm:$0xff]
    %v639 = vld [vmem:[#allocation10 + $0xe78] sm:$0xff]
    %v640 = vld [vmem:[#allocation10 + $0xe80] sm:$0xff]
    %v641 = vld [vmem:[#allocation10 + $0xe88] sm:$0xff]
    %v642 = vld [vmem:[#allocation10 + $0xe90] sm:$0xff]
    %v643 = vld [vmem:[#allocation10 + $0xe98] sm:$0xff]
    %v644 = vld [vmem:[#allocation10 + $0xea0] sm:$0xff]
    %v645 = vld [vmem:[#allocation10 + $0xea8] sm:$0xff]
    %v646 = vld [vmem:[#allocation10 + $0xeb0] sm:$0xff]
    %v647 = vld [vmem:[#allocation10 + $0xeb8] sm:$0xff]
    %v648 = vld [vmem:[#allocation10 + $0xec0] sm:$0xff]
    %v649 = vld [vmem:[#allocation10 + $0xec8] sm:$0xff]
    %v650 = vld [vmem:[#allocation10 + $0xed0] sm:$0xff]
    %v651 = vld [vmem:[#allocation10 + $0xed8] sm:$0xff]
    %v652 = vld [vmem:[#allocation10 + $0xee0] sm:$0xff]
    %v653 = vld [vmem:[#allocation10 + $0xee8] sm:$0xff]
    %v654 = vld [vmem:[#allocation10 + $0xef0] sm:$0xff]
    %v655 = vld [vmem:[#allocation10 + $0xef8] sm:$0xff]
    %v656 = vld [vmem:[#allocation10 + $0xf00] sm:$0xff]
    %v657 = vld [vmem:[#allocation10 + $0xf08] sm:$0xff]
    %v658 = vld [vmem:[#allocation10 + $0xf10] sm:$0xff]
    %v659 = vld [vmem:[#allocation10 + $0xf18] sm:$0xff]
    %v660 = vld [vmem:[#allocation10 + $0xf20] sm:$0xff]
    %v661 = vld [vmem:[#allocation10 + $0xf28] sm:$0xff]
    %v662 = vld [vmem:[#allocation10 + $0xf30] sm:$0xff]
    %v663 = vld [vmem:[#allocation10 + $0xf38] sm:$0xff]
    %v664 = vld [vmem:[#allocation10 + $0xf40] sm:$0xff]
    %v665 = vld [vmem:[#allocation10 + $0xf48] sm:$0xff]
    %v666 = vld [vmem:[#allocation10 + $0xf50] sm:$0xff]
    %v667 = vld [vmem:[#allocation10 + $0xf58] sm:$0xff]
    %v668 = vld [vmem:[#allocation10 + $0xf60] sm:$0xff]
    %v669 = vld [vmem:[#allocation10 + $0xf68] sm:$0xff]
    %v670 = vld [vmem:[#allocation10 + $0xf70] sm:$0xff]
    %v671 = vld [vmem:[#allocation10 + $0xf78] sm:$0xff]
    %v672 = vld [vmem:[#allocation10 + $0xf80] sm:$0xff]
    %v673 = vld [vmem:[#allocation10 + $0xf88] sm:$0xff]
    %v674 = vld [vmem:[#allocation10 + $0xf90] sm:$0xff]
    %v675 = vld [vmem:[#allocation10 + $0xf98] sm:$0xff]
    %v676 = vld [vmem:[#allocation10 + $0xfa0] sm:$0xff]
    %v677 = vld [vmem:[#allocation10 + $0xfa8] sm:$0xff]
    %v678 = vld [vmem:[#allocation10 + $0xfb0] sm:$0xff]
    %v679 = vld [vmem:[#allocation10 + $0xfb8] sm:$0xff]
    %v680 = vld [vmem:[#allocation10 + $0xfc0] sm:$0xff]
    %v681 = vld [vmem:[#allocation10 + $0xfc8] sm:$0xff]
    %v682 = vld [vmem:[#allocation10 + $0xfd0] sm:$0xff]
    %v683 = vld [vmem:[#allocation10 + $0xfd8] sm:$0xff]
    %v684 = vld [vmem:[#allocation10 + $0xfe0] sm:$0xff]
    %v685 = vld [vmem:[#allocation10 + $0xfe8] sm:$0xff]
    %v686 = vld [vmem:[#allocation10 + $0xff0] sm:$0xff]
    %v687 = vld [vmem:[#allocation10 + $0xff8] sm:$0xff]
    %v688 = vld [vmem:[#allocation10 + $0x1000] sm:$0xff]
    %v689 = vld [vmem:[#allocation10 + $0x1008] sm:$0xff]
    %v690 = vld [vmem:[#allocation10 + $0x1010] sm:$0xff]
    %v691 = vld [vmem:[#allocation10 + $0x1018] sm:$0xff]
    %v692 = vld [vmem:[#allocation10 + $0x1020] sm:$0xff]
    %v693 = vld [vmem:[#allocation10 + $0x1028] sm:$0xff]
    %v694 = vld [vmem:[#allocation10 + $0x1030] sm:$0xff]
    %v695 = vld [vmem:[#allocation10 + $0x1038] sm:$0xff]
    %v696 = vld [vmem:[#allocation10 + $0x1040] sm:$0xff]
    %v697 = vld [vmem:[#allocation10 + $0x1048] sm:$0xff]
    %v698 = vld [vmem:[#allocation10 + $0x1050] sm:$0xff]
    %v699 = vld [vmem:[#allocation10 + $0x1058] sm:$0xff]
    %v700 = vld [vmem:[#allocation10 + $0x1060] sm:$0xff]
    %v701 = vld [vmem:[#allocation10 + $0x1068] sm:$0xff]
    %v702 = vld [vmem:[#allocation10 + $0x1070] sm:$0xff]
    %v703 = vld [vmem:[#allocation10 + $0x1078] sm:$0xff]
    %v704 = vld [vmem:[#allocation10 + $0x1080] sm:$0xff]
    %v705 = vld [vmem:[#allocation10 + $0x1088] sm:$0xff]
    %v706 = vld [vmem:[#allocation10 + $0x1090] sm:$0xff]
    %v707 = vld [vmem:[#allocation10 + $0x1098] sm:$0xff]
    %v708 = vld [vmem:[#allocation10 + $0x10a0] sm:$0xff]
    %v709 = vld [vmem:[#allocation10 + $0x10a8] sm:$0xff]
    %v710 = vld [vmem:[#allocation10 + $0x10b0] sm:$0xff]
    %v711 = vld [vmem:[#allocation10 + $0x10b8] sm:$0xff]
    %v712 = vld [vmem:[#allocation10 + $0x10c0] sm:$0xff]
    %v713 = vld [vmem:[#allocation10 + $0x10c8] sm:$0xff]
    %v714 = vld [vmem:[#allocation10 + $0x10d0] sm:$0xff]
    %v715 = vld [vmem:[#allocation10 + $0x10d8] sm:$0xff]
    %v716 = vld [vmem:[#allocation10 + $0x10e0] sm:$0xff]
    %v717 = vld [vmem:[#allocation10 + $0x10e8] sm:$0xff]
    %v718 = vld [vmem:[#allocation10 + $0x10f0] sm:$0xff]
    %v719 = vld [vmem:[#allocation10 + $0x10f8] sm:$0xff]
    %v720 = vld [vmem:[#allocation10 + $0x1100] sm:$0xff]
    %v721 = vld [vmem:[#allocation10 + $0x1108] sm:$0xff]
    %v722 = vld [vmem:[#allocation10 + $0x1110] sm:$0xff]
    %v723 = vld [vmem:[#allocation10 + $0x1118] sm:$0xff]
    %v724 = vld [vmem:[#allocation10 + $0x1120] sm:$0xff]
    %v725 = vld [vmem:[#allocation10 + $0x1128] sm:$0xff]
    %v726 = vld [vmem:[#allocation10 + $0x1130] sm:$0xff]
    %v727 = vld [vmem:[#allocation10 + $0x1138] sm:$0xff]
    %v728 = vld [vmem:[#allocation10 + $0x1140] sm:$0xff]
    %v729 = vld [vmem:[#allocation10 + $0x1148] sm:$0xff]
    %v730 = vld [vmem:[#allocation10 + $0x1150] sm:$0xff]
    %v731 = vld [vmem:[#allocation10 + $0x1158] sm:$0xff]
    %v732 = vld [vmem:[#allocation10 + $0x1160] sm:$0xff]
    %v733 = vld [vmem:[#allocation10 + $0x1168] sm:$0xff]
    %v734 = vld [vmem:[#allocation10 + $0x1170] sm:$0xff]
    %v735 = vld [vmem:[#allocation10 + $0x1178] sm:$0xff]
    %v736 = vld [vmem:[#allocation10 + $0x1180] sm:$0xff]
    %v737 = vld [vmem:[#allocation10 + $0x1188] sm:$0xff]
    %v738 = vld [vmem:[#allocation10 + $0x1190] sm:$0xff]
    %v739 = vld [vmem:[#allocation10 + $0x1198] sm:$0xff]
    %v740 = vld [vmem:[#allocation10 + $0x11a0] sm:$0xff]
    %v741 = vld [vmem:[#allocation10 + $0x11a8] sm:$0xff]
    %v742 = vld [vmem:[#allocation10 + $0x11b0] sm:$0xff]
    %v743 = vld [vmem:[#allocation10 + $0x11b8] sm:$0xff]
    %v744 = vld [vmem:[#allocation10 + $0x11c0] sm:$0xff]
    %v745 = vld [vmem:[#allocation10 + $0x11c8] sm:$0xff]
    %v746 = vld [vmem:[#allocation10 + $0x11d0] sm:$0xff]
    %v747 = vld [vmem:[#allocation10 + $0x11d8] sm:$0xff]
    %v748 = vld [vmem:[#allocation10 + $0x11e0] sm:$0xff]
    %v749 = vld [vmem:[#allocation10 + $0x11e8] sm:$0xff]
    %v750 = vld [vmem:[#allocation10 + $0x11f0] sm:$0xff]
    %v751 = vld [vmem:[#allocation10 + $0x11f8] sm:$0xff]
    %v752 = vld [vmem:[#allocation12] sm:$0x3f]
    %v754 = vperm.slane %v752, 0
    %v755 = vperm.slane %v752, 1
    %v756 = vperm.slane %v752, 2
    %v757 = vperm.slane %v752, 3
    %v758 = vperm.slane %v752, 4
    %v759 = vperm.slane %v752, 5
    %766 = vmatpush.msra.mxu0 %v266
    %767 = vmatpush.msra.mxu0 %v260
    %768 = vmatpush.msra.mxu0 %v254
    %769 = vmatpush.msra.mxu0 %v248
    %770 = vmatpush.msra.mxu0 %v242
    %771 = vmatpush.msra.mxu0 %v236
    %772 = vmatpush.msra.mxu0 %v230
    %773 = vmatpush.msra.mxu0 %v224
    %774 = vmatpush.msra.mxu0 %v218
    %775 = vmatpush.msra.mxu0 %v212
    %776 = vmatpush.msra.mxu0 %v206
    %777 = vmatpush.msra.mxu0 %v200
    %778 = vmatpush.msra.mxu0 %v194
    %779 = vmatpush.msra.mxu0 %v188
    %780 = vmatpush.msra.mxu0 %v182
    %781 = vmatpush.msra.mxu0 %v176
    %782 = vmatmul.f32.gmra.mxu0 %v170
    %v783 = vpop.f32.mrf.mxu0
    %v784 = vadd.f32 %v754, %v783
    %785 = vdwg.mxu0
    %786 = vmatpush.msra.mxu0 %v362
    %787 = vmatpush.msra.mxu0 %v356
    %788 = vmatpush.msra.mxu0 %v350
    %789 = vmatpush.msra.mxu0 %v344
    %790 = vmatpush.msra.mxu0 %v338
    %791 = vmatpush.msra.mxu0 %v332
    %792 = vmatpush.msra.mxu0 %v326
    %793 = vmatpush.msra.mxu0 %v320
    %794 = vmatpush.msra.mxu0 %v314
    %795 = vmatpush.msra.mxu0 %v308
    %796 = vmatpush.msra.mxu0 %v302
    %797 = vmatpush.msra.mxu0 %v296
    %798 = vmatpush.msra.mxu0 %v290
    %799 = vmatpush.msra.mxu0 %v284
    %800 = vmatpush.msra.mxu0 %v278
    %801 = vmatpush.msra.mxu0 %v272
    %802 = vmatmul.f32.gmra.mxu0 %v171
    %v803 = vpop.f32.mrf.mxu0
    %v804 = vadd.f32 %v784, %v803
    %805 = vdwg.mxu0
    %806 = vmatpush.msra.mxu0 %v458
    %807 = vmatpush.msra.mxu0 %v452
    %808 = vmatpush.msra.mxu0 %v446
    %809 = vmatpush.msra.mxu0 %v440
    %810 = vmatpush.msra.mxu0 %v434
    %811 = vmatpush.msra.mxu0 %v428
    %812 = vmatpush.msra.mxu0 %v422
    %813 = vmatpush.msra.mxu0 %v416
    %814 = vmatpush.msra.mxu0 %v410
    %815 = vmatpush.msra.mxu0 %v404
    %816 = vmatpush.msra.mxu0 %v398
    %817 = vmatpush.msra.mxu0 %v392
    %818 = vmatpush.msra.mxu0 %v386
    %819 = vmatpush.msra.mxu0 %v380
    %820 = vmatpush.msra.mxu0 %v374
    %821 = vmatpush.msra.mxu0 %v368
    %822 = vmatmul.f32.gmra.mxu0 %v172
    %v823 = vpop.f32.mrf.mxu0
    %v824 = vadd.f32 %v804, %v823
    %825 = vdwg.mxu0
    %826 = vmatpush.msra.mxu0 %v554
    %827 = vmatpush.msra.mxu0 %v548
    %828 = vmatpush.msra.mxu0 %v542
    %829 = vmatpush.msra.mxu0 %v536
    %830 = vmatpush.msra.mxu0 %v530
    %831 = vmatpush.msra.mxu0 %v524
    %832 = vmatpush.msra.mxu0 %v518
    %833 = vmatpush.msra.mxu0 %v512
    %834 = vmatpush.msra.mxu0 %v506
    %835 = vmatpush.msra.mxu0 %v500
    %836 = vmatpush.msra.mxu0 %v494
    %837 = vmatpush.msra.mxu0 %v488
    %838 = vmatpush.msra.mxu0 %v482
    %839 = vmatpush.msra.mxu0 %v476
    %840 = vmatpush.msra.mxu0 %v470
    %841 = vmatpush.msra.mxu0 %v464
    %842 = vmatmul.f32.gmra.mxu0 %v173
    %v843 = vpop.f32.mrf.mxu0
    %v844 = vadd.f32 %v824, %v843
    %845 = vdwg.mxu0
    %846 = vmatpush.msra.mxu0 %v650
    %847 = vmatpush.msra.mxu0 %v644
    %848 = vmatpush.msra.mxu0 %v638
    %849 = vmatpush.msra.mxu0 %v632
    %850 = vmatpush.msra.mxu0 %v626
    %851 = vmatpush.msra.mxu0 %v620
    %852 = vmatpush.msra.mxu0 %v614
    %853 = vmatpush.msra.mxu0 %v608
    %854 = vmatpush.msra.mxu0 %v602
    %855 = vmatpush.msra.mxu0 %v596
    %856 = vmatpush.msra.mxu0 %v590
    %857 = vmatpush.msra.mxu0 %v584
    %858 = vmatpush.msra.mxu0 %v578
    %859 = vmatpush.msra.mxu0 %v572
    %860 = vmatpush.msra.mxu0 %v566
    %861 = vmatpush.msra.mxu0 %v560
    %862 = vmatmul.f32.gmra.mxu0 %v174
    %v863 = vpop.f32.mrf.mxu0
    %v864 = vadd.f32 %v844, %v863
    %865 = vdwg.mxu0
    %866 = vmatpush.msra.mxu0 %v746
    %867 = vmatpush.msra.mxu0 %v740
    %868 = vmatpush.msra.mxu0 %v734
    %869 = vmatpush.msra.mxu0 %v728
    %870 = vmatpush.msra.mxu0 %v722
    %871 = vmatpush.msra.mxu0 %v716
    %872 = vmatpush.msra.mxu0 %v710
    %873 = vmatpush.msra.mxu0 %v704
    %874 = vmatpush.msra.mxu0 %v698
    %875 = vmatpush.msra.mxu0 %v692
    %876 = vmatpush.msra.mxu0 %v686
    %877 = vmatpush.msra.mxu0 %v680
    %878 = vmatpush.msra.mxu0 %v674
    %879 = vmatpush.msra.mxu0 %v668
    %880 = vmatpush.msra.mxu0 %v662
    %881 = vmatpush.msra.mxu0 %v656
    %882 = vmatmul.f32.gmra.mxu0 %v175
    %v883 = vpop.f32.mrf.mxu0
    %v884 = vadd.f32 %v864, %v883
    %885 = vdwg.mxu0
    %886 = vmatpush.msra.mxu0 %v267
    %887 = vmatpush.msra.mxu0 %v261
    %888 = vmatpush.msra.mxu0 %v255
    %889 = vmatpush.msra.mxu0 %v249
    %890 = vmatpush.msra.mxu0 %v243
    %891 = vmatpush.msra.mxu0 %v237
    %892 = vmatpush.msra.mxu0 %v231
    %893 = vmatpush.msra.mxu0 %v225
    %894 = vmatpush.msra.mxu0 %v219
    %895 = vmatpush.msra.mxu0 %v213
    %896 = vmatpush.msra.mxu0 %v207
    %897 = vmatpush.msra.mxu0 %v201
    %898 = vmatpush.msra.mxu0 %v195
    %899 = vmatpush.msra.mxu0 %v189
    %900 = vmatpush.msra.mxu0 %v183
    %901 = vmatpush.msra.mxu0 %v177
    %902 = vmatmul.f32.gmra.mxu0 %v170
    %v903 = vpop.f32.mrf.mxu0
    %v904 = vadd.f32 %v755, %v903
    %905 = vdwg.mxu0
    %906 = vmatpush.msra.mxu0 %v363
    %907 = vmatpush.msra.mxu0 %v357
    %908 = vmatpush.msra.mxu0 %v351
    %909 = vmatpush.msra.mxu0 %v345
    %910 = vmatpush.msra.mxu0 %v339
    %911 = vmatpush.msra.mxu0 %v333
    %912 = vmatpush.msra.mxu0 %v327
    %913 = vmatpush.msra.mxu0 %v321
    %914 = vmatpush.msra.mxu0 %v315
    %915 = vmatpush.msra.mxu0 %v309
    %916 = vmatpush.msra.mxu0 %v303
    %917 = vmatpush.msra.mxu0 %v297
    %918 = vmatpush.msra.mxu0 %v291
    %919 = vmatpush.msra.mxu0 %v285
    %920 = vmatpush.msra.mxu0 %v279
    %921 = vmatpush.msra.mxu0 %v273
    %922 = vmatmul.f32.gmra.mxu0 %v171
    %v923 = vpop.f32.mrf.mxu0
    %v924 = vadd.f32 %v904, %v923
    %925 = vdwg.mxu0
    %926 = vmatpush.msra.mxu0 %v459
    %927 = vmatpush.msra.mxu0 %v453
    %928 = vmatpush.msra.mxu0 %v447
    %929 = vmatpush.msra.mxu0 %v441
    %930 = vmatpush.msra.mxu0 %v435
    %931 = vmatpush.msra.mxu0 %v429
    %932 = vmatpush.msra.mxu0 %v423
    %933 = vmatpush.msra.mxu0 %v417
    %934 = vmatpush.msra.mxu0 %v411
    %935 = vmatpush.msra.mxu0 %v405
    %936 = vmatpush.msra.mxu0 %v399
    %937 = vmatpush.msra.mxu0 %v393
    %938 = vmatpush.msra.mxu0 %v387
    %939 = vmatpush.msra.mxu0 %v381
    %940 = vmatpush.msra.mxu0 %v375
    %941 = vmatpush.msra.mxu0 %v369
    %942 = vmatmul.f32.gmra.mxu0 %v172
    %v943 = vpop.f32.mrf.mxu0
    %v944 = vadd.f32 %v924, %v943
    %945 = vdwg.mxu0
    %946 = vmatpush.msra.mxu0 %v555
    %947 = vmatpush.msra.mxu0 %v549
    %948 = vmatpush.msra.mxu0 %v543
    %949 = vmatpush.msra.mxu0 %v537
    %950 = vmatpush.msra.mxu0 %v531
    %951 = vmatpush.msra.mxu0 %v525
    %952 = vmatpush.msra.mxu0 %v519
    %953 = vmatpush.msra.mxu0 %v513
    %954 = vmatpush.msra.mxu0 %v507
    %955 = vmatpush.msra.mxu0 %v501
    %956 = vmatpush.msra.mxu0 %v495
    %957 = vmatpush.msra.mxu0 %v489
    %958 = vmatpush.msra.mxu0 %v483
    %959 = vmatpush.msra.mxu0 %v477
    %960 = vmatpush.msra.mxu0 %v471
    %961 = vmatpush.msra.mxu0 %v465
    %962 = vmatmul.f32.gmra.mxu0 %v173
    %v963 = vpop.f32.mrf.mxu0
    %v964 = vadd.f32 %v944, %v963
    %965 = vdwg.mxu0
    %966 = vmatpush.msra.mxu0 %v651
    %967 = vmatpush.msra.mxu0 %v645
    %968 = vmatpush.msra.mxu0 %v639
    %969 = vmatpush.msra.mxu0 %v633
    %970 = vmatpush.msra.mxu0 %v627
    %971 = vmatpush.msra.mxu0 %v621
    %972 = vmatpush.msra.mxu0 %v615
    %973 = vmatpush.msra.mxu0 %v609
    %974 = vmatpush.msra.mxu0 %v603
    %975 = vmatpush.msra.mxu0 %v597
    %976 = vmatpush.msra.mxu0 %v591
    %977 = vmatpush.msra.mxu0 %v585
    %978 = vmatpush.msra.mxu0 %v579
    %979 = vmatpush.msra.mxu0 %v573
    %980 = vmatpush.msra.mxu0 %v567
    %981 = vmatpush.msra.mxu0 %v561
    %982 = vmatmul.f32.gmra.mxu0 %v174
    %v983 = vpop.f32.mrf.mxu0
    %v984 = vadd.f32 %v964, %v983
    %985 = vdwg.mxu0
    %986 = vmatpush.msra.mxu0 %v747
    %987 = vmatpush.msra.mxu0 %v741
    %988 = vmatpush.msra.mxu0 %v735
    %989 = vmatpush.msra.mxu0 %v729
    %990 = vmatpush.msra.mxu0 %v723
    %991 = vmatpush.msra.mxu0 %v717
    %992 = vmatpush.msra.mxu0 %v711
    %993 = vmatpush.msra.mxu0 %v705
    %994 = vmatpush.msra.mxu0 %v699
    %995 = vmatpush.msra.mxu0 %v693
    %996 = vmatpush.msra.mxu0 %v687
    %997 = vmatpush.msra.mxu0 %v681
    %998 = vmatpush.msra.mxu0 %v675
    %999 = vmatpush.msra.mxu0 %v669
    %1000 = vmatpush.msra.mxu0 %v663
    %1001 = vmatpush.msra.mxu0 %v657
    %1002 = vmatmul.f32.gmra.mxu0 %v175
    %v1003 = vpop.f32.mrf.mxu0
    %v1004 = vadd.f32 %v984, %v1003
    %1005 = vdwg.mxu0
    %1006 = vmatpush.msra.mxu0 %v268
    %1007 = vmatpush.msra.mxu0 %v262
    %1008 = vmatpush.msra.mxu0 %v256
    %1009 = vmatpush.msra.mxu0 %v250
    %1010 = vmatpush.msra.mxu0 %v244
    %1011 = vmatpush.msra.mxu0 %v238
    %1012 = vmatpush.msra.mxu0 %v232
    %1013 = vmatpush.msra.mxu0 %v226
    %1014 = vmatpush.msra.mxu0 %v220
    %1015 = vmatpush.msra.mxu0 %v214
    %1016 = vmatpush.msra.mxu0 %v208
    %1017 = vmatpush.msra.mxu0 %v202
    %1018 = vmatpush.msra.mxu0 %v196
    %1019 = vmatpush.msra.mxu0 %v190
    %1020 = vmatpush.msra.mxu0 %v184
    %1021 = vmatpush.msra.mxu0 %v178
    %1022 = vmatmul.f32.gmra.mxu0 %v170
    %v1023 = vpop.f32.mrf.mxu0
    %v1024 = vadd.f32 %v756, %v1023
    %1025 = vdwg.mxu0
    %1026 = vmatpush.msra.mxu0 %v364
    %1027 = vmatpush.msra.mxu0 %v358
    %1028 = vmatpush.msra.mxu0 %v352
    %1029 = vmatpush.msra.mxu0 %v346
    %1030 = vmatpush.msra.mxu0 %v340
    %1031 = vmatpush.msra.mxu0 %v334
    %1032 = vmatpush.msra.mxu0 %v328
    %1033 = vmatpush.msra.mxu0 %v322
    %1034 = vmatpush.msra.mxu0 %v316
    %1035 = vmatpush.msra.mxu0 %v310
    %1036 = vmatpush.msra.mxu0 %v304
    %1037 = vmatpush.msra.mxu0 %v298
    %1038 = vmatpush.msra.mxu0 %v292
    %1039 = vmatpush.msra.mxu0 %v286
    %1040 = vmatpush.msra.mxu0 %v280
    %1041 = vmatpush.msra.mxu0 %v274
    %1042 = vmatmul.f32.gmra.mxu0 %v171
    %v1043 = vpop.f32.mrf.mxu0
    %v1044 = vadd.f32 %v1024, %v1043
    %1045 = vdwg.mxu0
    %1046 = vmatpush.msra.mxu0 %v460
    %1047 = vmatpush.msra.mxu0 %v454
    %1048 = vmatpush.msra.mxu0 %v448
    %1049 = vmatpush.msra.mxu0 %v442
    %1050 = vmatpush.msra.mxu0 %v436
    %1051 = vmatpush.msra.mxu0 %v430
    %1052 = vmatpush.msra.mxu0 %v424
    %1053 = vmatpush.msra.mxu0 %v418
    %1054 = vmatpush.msra.mxu0 %v412
    %1055 = vmatpush.msra.mxu0 %v406
    %1056 = vmatpush.msra.mxu0 %v400
    %1057 = vmatpush.msra.mxu0 %v394
    %1058 = vmatpush.msra.mxu0 %v388
    %1059 = vmatpush.msra.mxu0 %v382
    %1060 = vmatpush.msra.mxu0 %v376
    %1061 = vmatpush.msra.mxu0 %v370
    %1062 = vmatmul.f32.gmra.mxu0 %v172
    %v1063 = vpop.f32.mrf.mxu0
    %v1064 = vadd.f32 %v1044, %v1063
    %1065 = vdwg.mxu0
    %1066 = vmatpush.msra.mxu0 %v556
    %1067 = vmatpush.msra.mxu0 %v550
    %1068 = vmatpush.msra.mxu0 %v544
    %1069 = vmatpush.msra.mxu0 %v538
    %1070 = vmatpush.msra.mxu0 %v532
    %1071 = vmatpush.msra.mxu0 %v526
    %1072 = vmatpush.msra.mxu0 %v520
    %1073 = vmatpush.msra.mxu0 %v514
    %1074 = vmatpush.msra.mxu0 %v508
    %1075 = vmatpush.msra.mxu0 %v502
    %1076 = vmatpush.msra.mxu0 %v496
    %1077 = vmatpush.msra.mxu0 %v490
    %1078 = vmatpush.msra.mxu0 %v484
    %1079 = vmatpush.msra.mxu0 %v478
    %1080 = vmatpush.msra.mxu0 %v472
    %1081 = vmatpush.msra.mxu0 %v466
    %1082 = vmatmul.f32.gmra.mxu0 %v173
    %v1083 = vpop.f32.mrf.mxu0
    %v1084 = vadd.f32 %v1064, %v1083
    %1085 = vdwg.mxu0
    %1086 = vmatpush.msra.mxu0 %v652
    %1087 = vmatpush.msra.mxu0 %v646
    %1088 = vmatpush.msra.mxu0 %v640
    %1089 = vmatpush.msra.mxu0 %v634
    %1090 = vmatpush.msra.mxu0 %v628
    %1091 = vmatpush.msra.mxu0 %v622
    %1092 = vmatpush.msra.mxu0 %v616
    %1093 = vmatpush.msra.mxu0 %v610
    %1094 = vmatpush.msra.mxu0 %v604
    %1095 = vmatpush.msra.mxu0 %v598
    %1096 = vmatpush.msra.mxu0 %v592
    %1097 = vmatpush.msra.mxu0 %v586
    %1098 = vmatpush.msra.mxu0 %v580
    %1099 = vmatpush.msra.mxu0 %v574
    %1100 = vmatpush.msra.mxu0 %v568
    %1101 = vmatpush.msra.mxu0 %v562
    %1102 = vmatmul.f32.gmra.mxu0 %v174
    %v1103 = vpop.f32.mrf.mxu0
    %v1104 = vadd.f32 %v1084, %v1103
    %1105 = vdwg.mxu0
    %1106 = vmatpush.msra.mxu0 %v748
    %1107 = vmatpush.msra.mxu0 %v742
    %1108 = vmatpush.msra.mxu0 %v736
    %1109 = vmatpush.msra.mxu0 %v730
    %1110 = vmatpush.msra.mxu0 %v724
    %1111 = vmatpush.msra.mxu0 %v718
    %1112 = vmatpush.msra.mxu0 %v712
    %1113 = vmatpush.msra.mxu0 %v706
    %1114 = vmatpush.msra.mxu0 %v700
    %1115 = vmatpush.msra.mxu0 %v694
    %1116 = vmatpush.msra.mxu0 %v688
    %1117 = vmatpush.msra.mxu0 %v682
    %1118 = vmatpush.msra.mxu0 %v676
    %1119 = vmatpush.msra.mxu0 %v670
    %1120 = vmatpush.msra.mxu0 %v664
    %1121 = vmatpush.msra.mxu0 %v658
    %1122 = vmatmul.f32.gmra.mxu0 %v175
    %v1123 = vpop.f32.mrf.mxu0
    %v1124 = vadd.f32 %v1104, %v1123
    %1125 = vdwg.mxu0
    %1126 = vmatpush.msra.mxu0 %v269
    %1127 = vmatpush.msra.mxu0 %v263
    %1128 = vmatpush.msra.mxu0 %v257
    %1129 = vmatpush.msra.mxu0 %v251
    %1130 = vmatpush.msra.mxu0 %v245
    %1131 = vmatpush.msra.mxu0 %v239
    %1132 = vmatpush.msra.mxu0 %v233
    %1133 = vmatpush.msra.mxu0 %v227
    %1134 = vmatpush.msra.mxu0 %v221
    %1135 = vmatpush.msra.mxu0 %v215
    %1136 = vmatpush.msra.mxu0 %v209
    %1137 = vmatpush.msra.mxu0 %v203
    %1138 = vmatpush.msra.mxu0 %v197
    %1139 = vmatpush.msra.mxu0 %v191
    %1140 = vmatpush.msra.mxu0 %v185
    %1141 = vmatpush.msra.mxu0 %v179
    %1142 = vmatmul.f32.gmra.mxu0 %v170
    %v1143 = vpop.f32.mrf.mxu0
    %v1144 = vadd.f32 %v757, %v1143
    %1145 = vdwg.mxu0
    %1146 = vmatpush.msra.mxu0 %v365
    %1147 = vmatpush.msra.mxu0 %v359
    %1148 = vmatpush.msra.mxu0 %v353
    %1149 = vmatpush.msra.mxu0 %v347
    %1150 = vmatpush.msra.mxu0 %v341
    %1151 = vmatpush.msra.mxu0 %v335
    %1152 = vmatpush.msra.mxu0 %v329
    %1153 = vmatpush.msra.mxu0 %v323
    %1154 = vmatpush.msra.mxu0 %v317
    %1155 = vmatpush.msra.mxu0 %v311
    %1156 = vmatpush.msra.mxu0 %v305
    %1157 = vmatpush.msra.mxu0 %v299
    %1158 = vmatpush.msra.mxu0 %v293
    %1159 = vmatpush.msra.mxu0 %v287
    %1160 = vmatpush.msra.mxu0 %v281
    %1161 = vmatpush.msra.mxu0 %v275
    %1162 = vmatmul.f32.gmra.mxu0 %v171
    %v1163 = vpop.f32.mrf.mxu0
    %v1164 = vadd.f32 %v1144, %v1163
    %1165 = vdwg.mxu0
    %1166 = vmatpush.msra.mxu0 %v461
    %1167 = vmatpush.msra.mxu0 %v455
    %1168 = vmatpush.msra.mxu0 %v449
    %1169 = vmatpush.msra.mxu0 %v443
    %1170 = vmatpush.msra.mxu0 %v437
    %1171 = vmatpush.msra.mxu0 %v431
    %1172 = vmatpush.msra.mxu0 %v425
    %1173 = vmatpush.msra.mxu0 %v419
    %1174 = vmatpush.msra.mxu0 %v413
    %1175 = vmatpush.msra.mxu0 %v407
    %1176 = vmatpush.msra.mxu0 %v401
    %1177 = vmatpush.msra.mxu0 %v395
    %1178 = vmatpush.msra.mxu0 %v389
    %1179 = vmatpush.msra.mxu0 %v383
    %1180 = vmatpush.msra.mxu0 %v377
    %1181 = vmatpush.msra.mxu0 %v371
    %1182 = vmatmul.f32.gmra.mxu0 %v172
    %v1183 = vpop.f32.mrf.mxu0
    %v1184 = vadd.f32 %v1164, %v1183
    %1185 = vdwg.mxu0
    %1186 = vmatpush.msra.mxu0 %v557
    %1187 = vmatpush.msra.mxu0 %v551
    %1188 = vmatpush.msra.mxu0 %v545
    %1189 = vmatpush.msra.mxu0 %v539
    %1190 = vmatpush.msra.mxu0 %v533
    %1191 = vmatpush.msra.mxu0 %v527
    %1192 = vmatpush.msra.mxu0 %v521
    %1193 = vmatpush.msra.mxu0 %v515
    %1194 = vmatpush.msra.mxu0 %v509
    %1195 = vmatpush.msra.mxu0 %v503
    %1196 = vmatpush.msra.mxu0 %v497
    %1197 = vmatpush.msra.mxu0 %v491
    %1198 = vmatpush.msra.mxu0 %v485
    %1199 = vmatpush.msra.mxu0 %v479
    %1200 = vmatpush.msra.mxu0 %v473
    %1201 = vmatpush.msra.mxu0 %v467
    %1202 = vmatmul.f32.gmra.mxu0 %v173
    %v1203 = vpop.f32.mrf.mxu0
    %v1204 = vadd.f32 %v1184, %v1203
    %1205 = vdwg.mxu0
    %1206 = vmatpush.msra.mxu0 %v653
    %1207 = vmatpush.msra.mxu0 %v647
    %1208 = vmatpush.msra.mxu0 %v641
    %1209 = vmatpush.msra.mxu0 %v635
    %1210 = vmatpush.msra.mxu0 %v629
    %1211 = vmatpush.msra.mxu0 %v623
    %1212 = vmatpush.msra.mxu0 %v617
    %1213 = vmatpush.msra.mxu0 %v611
    %1214 = vmatpush.msra.mxu0 %v605
    %1215 = vmatpush.msra.mxu0 %v599
    %1216 = vmatpush.msra.mxu0 %v593
    %1217 = vmatpush.msra.mxu0 %v587
    %1218 = vmatpush.msra.mxu0 %v581
    %1219 = vmatpush.msra.mxu0 %v575
    %1220 = vmatpush.msra.mxu0 %v569
    %1221 = vmatpush.msra.mxu0 %v563
    %1222 = vmatmul.f32.gmra.mxu0 %v174
    %v1223 = vpop.f32.mrf.mxu0
    %v1224 = vadd.f32 %v1204, %v1223
    %1225 = vdwg.mxu0
    %1226 = vmatpush.msra.mxu0 %v749
    %1227 = vmatpush.msra.mxu0 %v743
    %1228 = vmatpush.msra.mxu0 %v737
    %1229 = vmatpush.msra.mxu0 %v731
    %1230 = vmatpush.msra.mxu0 %v725
    %1231 = vmatpush.msra.mxu0 %v719
    %1232 = vmatpush.msra.mxu0 %v713
    %1233 = vmatpush.msra.mxu0 %v707
    %1234 = vmatpush.msra.mxu0 %v701
    %1235 = vmatpush.msra.mxu0 %v695
    %1236 = vmatpush.msra.mxu0 %v689
    %1237 = vmatpush.msra.mxu0 %v683
    %1238 = vmatpush.msra.mxu0 %v677
    %1239 = vmatpush.msra.mxu0 %v671
    %1240 = vmatpush.msra.mxu0 %v665
    %1241 = vmatpush.msra.mxu0 %v659
    %1242 = vmatmul.f32.gmra.mxu0 %v175
    %v1243 = vpop.f32.mrf.mxu0
    %v1244 = vadd.f32 %v1224, %v1243
    %1245 = vdwg.mxu0
    %1246 = vmatpush.msra.mxu0 %v270
    %1247 = vmatpush.msra.mxu0 %v264
    %1248 = vmatpush.msra.mxu0 %v258
    %1249 = vmatpush.msra.mxu0 %v252
    %1250 = vmatpush.msra.mxu0 %v246
    %1251 = vmatpush.msra.mxu0 %v240
    %1252 = vmatpush.msra.mxu0 %v234
    %1253 = vmatpush.msra.mxu0 %v228
    %1254 = vmatpush.msra.mxu0 %v222
    %1255 = vmatpush.msra.mxu0 %v216
    %1256 = vmatpush.msra.mxu0 %v210
    %1257 = vmatpush.msra.mxu0 %v204
    %1258 = vmatpush.msra.mxu0 %v198
    %1259 = vmatpush.msra.mxu0 %v192
    %1260 = vmatpush.msra.mxu0 %v186
    %1261 = vmatpush.msra.mxu0 %v180
    %1262 = vmatmul.f32.gmra.mxu0 %v170
    %v1263 = vpop.f32.mrf.mxu0
    %v1264 = vadd.f32 %v758, %v1263
    %1265 = vdwg.mxu0
    %1266 = vmatpush.msra.mxu0 %v366
    %1267 = vmatpush.msra.mxu0 %v360
    %1268 = vmatpush.msra.mxu0 %v354
    %1269 = vmatpush.msra.mxu0 %v348
    %1270 = vmatpush.msra.mxu0 %v342
    %1271 = vmatpush.msra.mxu0 %v336
    %1272 = vmatpush.msra.mxu0 %v330
    %1273 = vmatpush.msra.mxu0 %v324
    %1274 = vmatpush.msra.mxu0 %v318
    %1275 = vmatpush.msra.mxu0 %v312
    %1276 = vmatpush.msra.mxu0 %v306
    %1277 = vmatpush.msra.mxu0 %v300
    %1278 = vmatpush.msra.mxu0 %v294
    %1279 = vmatpush.msra.mxu0 %v288
    %1280 = vmatpush.msra.mxu0 %v282
    %1281 = vmatpush.msra.mxu0 %v276
    %1282 = vmatmul.f32.gmra.mxu0 %v171
    %v1283 = vpop.f32.mrf.mxu0
    %v1284 = vadd.f32 %v1264, %v1283
    %1285 = vdwg.mxu0
    %1286 = vmatpush.msra.mxu0 %v462
    %1287 = vmatpush.msra.mxu0 %v456
    %1288 = vmatpush.msra.mxu0 %v450
    %1289 = vmatpush.msra.mxu0 %v444
    %1290 = vmatpush.msra.mxu0 %v438
    %1291 = vmatpush.msra.mxu0 %v432
    %1292 = vmatpush.msra.mxu0 %v426
    %1293 = vmatpush.msra.mxu0 %v420
    %1294 = vmatpush.msra.mxu0 %v414
    %1295 = vmatpush.msra.mxu0 %v408
    %1296 = vmatpush.msra.mxu0 %v402
    %1297 = vmatpush.msra.mxu0 %v396
    %1298 = vmatpush.msra.mxu0 %v390
    %1299 = vmatpush.msra.mxu0 %v384
    %1300 = vmatpush.msra.mxu0 %v378
    %1301 = vmatpush.msra.mxu0 %v372
    %1302 = vmatmul.f32.gmra.mxu0 %v172
    %v1303 = vpop.f32.mrf.mxu0
    %v1304 = vadd.f32 %v1284, %v1303
    %1305 = vdwg.mxu0
    %1306 = vmatpush.msra.mxu0 %v558
    %1307 = vmatpush.msra.mxu0 %v552
    %1308 = vmatpush.msra.mxu0 %v546
    %1309 = vmatpush.msra.mxu0 %v540
    %1310 = vmatpush.msra.mxu0 %v534
    %1311 = vmatpush.msra.mxu0 %v528
    %1312 = vmatpush.msra.mxu0 %v522
    %1313 = vmatpush.msra.mxu0 %v516
    %1314 = vmatpush.msra.mxu0 %v510
    %1315 = vmatpush.msra.mxu0 %v504
    %1316 = vmatpush.msra.mxu0 %v498
    %1317 = vmatpush.msra.mxu0 %v492
    %1318 = vmatpush.msra.mxu0 %v486
    %1319 = vmatpush.msra.mxu0 %v480
    %1320 = vmatpush.msra.mxu0 %v474
    %1321 = vmatpush.msra.mxu0 %v468
    %1322 = vmatmul.f32.gmra.mxu0 %v173
    %v1323 = vpop.f32.mrf.mxu0
    %v1324 = vadd.f32 %v1304, %v1323
    %1325 = vdwg.mxu0
    %1326 = vmatpush.msra.mxu0 %v654
    %1327 = vmatpush.msra.mxu0 %v648
    %1328 = vmatpush.msra.mxu0 %v642
    %1329 = vmatpush.msra.mxu0 %v636
    %1330 = vmatpush.msra.mxu0 %v630
    %1331 = vmatpush.msra.mxu0 %v624
    %1332 = vmatpush.msra.mxu0 %v618
    %1333 = vmatpush.msra.mxu0 %v612
    %1334 = vmatpush.msra.mxu0 %v606
    %1335 = vmatpush.msra.mxu0 %v600
    %1336 = vmatpush.msra.mxu0 %v594
    %1337 = vmatpush.msra.mxu0 %v588
    %1338 = vmatpush.msra.mxu0 %v582
    %1339 = vmatpush.msra.mxu0 %v576
    %1340 = vmatpush.msra.mxu0 %v570
    %1341 = vmatpush.msra.mxu0 %v564
    %1342 = vmatmul.f32.gmra.mxu0 %v174
    %v1343 = vpop.f32.mrf.mxu0
    %v1344 = vadd.f32 %v1324, %v1343
    %1345 = vdwg.mxu0
    %1346 = vmatpush.msra.mxu0 %v750
    %1347 = vmatpush.msra.mxu0 %v744
    %1348 = vmatpush.msra.mxu0 %v738
    %1349 = vmatpush.msra.mxu0 %v732
    %1350 = vmatpush.msra.mxu0 %v726
    %1351 = vmatpush.msra.mxu0 %v720
    %1352 = vmatpush.msra.mxu0 %v714
    %1353 = vmatpush.msra.mxu0 %v708
    %1354 = vmatpush.msra.mxu0 %v702
    %1355 = vmatpush.msra.mxu0 %v696
    %1356 = vmatpush.msra.mxu0 %v690
    %1357 = vmatpush.msra.mxu0 %v684
    %1358 = vmatpush.msra.mxu0 %v678
    %1359 = vmatpush.msra.mxu0 %v672
    %1360 = vmatpush.msra.mxu0 %v666
    %1361 = vmatpush.msra.mxu0 %v660
    %1362 = vmatmul.f32.gmra.mxu0 %v175
    %v1363 = vpop.f32.mrf.mxu0
    %v1364 = vadd.f32 %v1344, %v1363
    %1365 = vdwg.mxu0
    %1366 = vmatpush.msra.mxu0 %v271
    %1367 = vmatpush.msra.mxu0 %v265
    %1368 = vmatpush.msra.mxu0 %v259
    %1369 = vmatpush.msra.mxu0 %v253
    %1370 = vmatpush.msra.mxu0 %v247
    %1371 = vmatpush.msra.mxu0 %v241
    %1372 = vmatpush.msra.mxu0 %v235
    %1373 = vmatpush.msra.mxu0 %v229
    %1374 = vmatpush.msra.mxu0 %v223
    %1375 = vmatpush.msra.mxu0 %v217
    %1376 = vmatpush.msra.mxu0 %v211
    %1377 = vmatpush.msra.mxu0 %v205
    %1378 = vmatpush.msra.mxu0 %v199
    %1379 = vmatpush.msra.mxu0 %v193
    %1380 = vmatpush.msra.mxu0 %v187
    %1381 = vmatpush.msra.mxu0 %v181
    %1382 = vmatmul.f32.gmra.mxu0 %v170
    %v1383 = vpop.f32.mrf.mxu0
    %v1384 = vadd.f32 %v759, %v1383
    %1385 = vdwg.mxu0
    %1386 = vmatpush.msra.mxu0 %v367
    %1387 = vmatpush.msra.mxu0 %v361
    %1388 = vmatpush.msra.mxu0 %v355
    %1389 = vmatpush.msra.mxu0 %v349
    %1390 = vmatpush.msra.mxu0 %v343
    %1391 = vmatpush.msra.mxu0 %v337
    %1392 = vmatpush.msra.mxu0 %v331
    %1393 = vmatpush.msra.mxu0 %v325
    %1394 = vmatpush.msra.mxu0 %v319
    %1395 = vmatpush.msra.mxu0 %v313
    %1396 = vmatpush.msra.mxu0 %v307
    %1397 = vmatpush.msra.mxu0 %v301
    %1398 = vmatpush.msra.mxu0 %v295
    %1399 = vmatpush.msra.mxu0 %v289
    %1400 = vmatpush.msra.mxu0 %v283
    %1401 = vmatpush.msra.mxu0 %v277
    %1402 = vmatmul.f32.gmra.mxu0 %v171
    %v1403 = vpop.f32.mrf.mxu0
    %v1404 = vadd.f32 %v1384, %v1403
    %1405 = vdwg.mxu0
    %1406 = vmatpush.msra.mxu0 %v463
    %1407 = vmatpush.msra.mxu0 %v457
    %1408 = vmatpush.msra.mxu0 %v451
    %1409 = vmatpush.msra.mxu0 %v445
    %1410 = vmatpush.msra.mxu0 %v439
    %1411 = vmatpush.msra.mxu0 %v433
    %1412 = vmatpush.msra.mxu0 %v427
    %1413 = vmatpush.msra.mxu0 %v421
    %1414 = vmatpush.msra.mxu0 %v415
    %1415 = vmatpush.msra.mxu0 %v409
    %1416 = vmatpush.msra.mxu0 %v403
    %1417 = vmatpush.msra.mxu0 %v397
    %1418 = vmatpush.msra.mxu0 %v391
    %1419 = vmatpush.msra.mxu0 %v385
    %1420 = vmatpush.msra.mxu0 %v379
    %1421 = vmatpush.msra.mxu0 %v373
    %1422 = vmatmul.f32.gmra.mxu0 %v172
    %v1423 = vpop.f32.mrf.mxu0
    %v1424 = vadd.f32 %v1404, %v1423
    %1425 = vdwg.mxu0
    %1426 = vmatpush.msra.mxu0 %v559
    %1427 = vmatpush.msra.mxu0 %v553
    %1428 = vmatpush.msra.mxu0 %v547
    %1429 = vmatpush.msra.mxu0 %v541
    %1430 = vmatpush.msra.mxu0 %v535
    %1431 = vmatpush.msra.mxu0 %v529
    %1432 = vmatpush.msra.mxu0 %v523
    %1433 = vmatpush.msra.mxu0 %v517
    %1434 = vmatpush.msra.mxu0 %v511
    %1435 = vmatpush.msra.mxu0 %v505
    %1436 = vmatpush.msra.mxu0 %v499
    %1437 = vmatpush.msra.mxu0 %v493
    %1438 = vmatpush.msra.mxu0 %v487
    %1439 = vmatpush.msra.mxu0 %v481
    %1440 = vmatpush.msra.mxu0 %v475
    %1441 = vmatpush.msra.mxu0 %v469
    %1442 = vmatmul.f32.gmra.mxu0 %v173
    %v1443 = vpop.f32.mrf.mxu0
    %v1444 = vadd.f32 %v1424, %v1443
    %1445 = vdwg.mxu0
    %1446 = vmatpush.msra.mxu0 %v655
    %1447 = vmatpush.msra.mxu0 %v649
    %1448 = vmatpush.msra.mxu0 %v643
    %1449 = vmatpush.msra.mxu0 %v637
    %1450 = vmatpush.msra.mxu0 %v631
    %1451 = vmatpush.msra.mxu0 %v625
    %1452 = vmatpush.msra.mxu0 %v619
    %1453 = vmatpush.msra.mxu0 %v613
    %1454 = vmatpush.msra.mxu0 %v607
    %1455 = vmatpush.msra.mxu0 %v601
    %1456 = vmatpush.msra.mxu0 %v595
    %1457 = vmatpush.msra.mxu0 %v589
    %1458 = vmatpush.msra.mxu0 %v583
    %1459 = vmatpush.msra.mxu0 %v577
    %1460 = vmatpush.msra.mxu0 %v571
    %1461 = vmatpush.msra.mxu0 %v565
    %1462 = vmatmul.f32.gmra.mxu0 %v174
    %v1463 = vpop.f32.mrf.mxu0
    %v1464 = vadd.f32 %v1444, %v1463
    %1465 = vdwg.mxu0
    %1466 = vmatpush.msra.mxu0 %v751
    %1467 = vmatpush.msra.mxu0 %v745
    %1468 = vmatpush.msra.mxu0 %v739
    %1469 = vmatpush.msra.mxu0 %v733
    %1470 = vmatpush.msra.mxu0 %v727
    %1471 = vmatpush.msra.mxu0 %v721
    %1472 = vmatpush.msra.mxu0 %v715
    %1473 = vmatpush.msra.mxu0 %v709
    %1474 = vmatpush.msra.mxu0 %v703
    %1475 = vmatpush.msra.mxu0 %v697
    %1476 = vmatpush.msra.mxu0 %v691
    %1477 = vmatpush.msra.mxu0 %v685
    %1478 = vmatpush.msra.mxu0 %v679
    %1479 = vmatpush.msra.mxu0 %v673
    %1480 = vmatpush.msra.mxu0 %v667
    %1481 = vmatpush.msra.mxu0 %v661
    %1482 = vmatmul.f32.gmra.mxu0 %v175
    %v1483 = vpop.f32.mrf.mxu0
    %v1484 = vadd.f32 %v1464, %v1483
    %1485 = vdwg.mxu0
    %1486 = vst [vmem:[#allocation18] sm:$0xff] %v884
    %1487 = vst [vmem:[#allocation18 + $0x8] sm:$0xff] %v1004
    %1488 = vst [vmem:[#allocation18 + $0x10] sm:$0xff] %v1124
    %1489 = vst [vmem:[#allocation18 + $0x18] sm:$0xff] %v1244
    %1490 = vst [vmem:[#allocation18 + $0x20] sm:$0xff] %v1364
    %1491 = vst [vmem:[#allocation18 + $0x28] sm:$0xff] %v1484
    %v1492 = vld [vmem:[#allocation7] sm:$0xff]
    %v1493 = vld [vmem:[#allocation7 + $0x8] sm:$0xff]
    %v1494 = vld [vmem:[#allocation7 + $0x10] sm:$0xff]
    %v1495 = vld [vmem:[#allocation7 + $0x18] sm:$0xff]
    %v1496 = vld [vmem:[#allocation7 + $0x20] sm:$0xff]
    %v1497 = vld [vmem:[#allocation7 + $0x28] sm:$0xff]
    %v1498 = vld [vmem:[%s6] sm:$0xff]
    %v1499 = vld [vmem:[%s6 + $0x8] sm:$0xff]
    %v1500 = vld [vmem:[%s6 + $0x10] sm:$0xff]
    %v1501 = vld [vmem:[%s6 + $0x18] sm:$0xff]
    %v1502 = vld [vmem:[%s6 + $0x20] sm:$0xff]
    %v1503 = vld [vmem:[%s6 + $0x28] sm:$0xff]
    %v1504 = vld [vmem:[%s6 + $0x30] sm:$0xff]
    %v1505 = vld [vmem:[%s6 + $0x38] sm:$0xff]
    %v1506 = vld [vmem:[%s6 + $0x40] sm:$0xff]
    %v1507 = vld [vmem:[%s6 + $0x48] sm:$0xff]
    %v1508 = vld [vmem:[%s6 + $0x50] sm:$0xff]
    %v1509 = vld [vmem:[%s6 + $0x58] sm:$0xff]
    %v1510 = vld [vmem:[%s6 + $0x60] sm:$0xff]
    %v1511 = vld [vmem:[%s6 + $0x68] sm:$0xff]
    %v1512 = vld [vmem:[%s6 + $0x70] sm:$0xff]
    %v1513 = vld [vmem:[%s6 + $0x78] sm:$0xff]
    %v1514 = vld [vmem:[%s6 + $0x80] sm:$0xff]
    %v1515 = vld [vmem:[%s6 + $0x88] sm:$0xff]
    %v1516 = vld [vmem:[%s6 + $0x90] sm:$0xff]
    %v1517 = vld [vmem:[%s6 + $0x98] sm:$0xff]
    %v1518 = vld [vmem:[%s6 + $0xa0] sm:$0xff]
    %v1519 = vld [vmem:[%s6 + $0xa8] sm:$0xff]
    %v1520 = vld [vmem:[%s6 + $0xb0] sm:$0xff]
    %v1521 = vld [vmem:[%s6 + $0xb8] sm:$0xff]
    %v1522 = vld [vmem:[%s6 + $0xc0] sm:$0xff]
    %v1523 = vld [vmem:[%s6 + $0xc8] sm:$0xff]
    %v1524 = vld [vmem:[%s6 + $0xd0] sm:$0xff]
    %v1525 = vld [vmem:[%s6 + $0xd8] sm:$0xff]
    %v1526 = vld [vmem:[%s6 + $0xe0] sm:$0xff]
    %v1527 = vld [vmem:[%s6 + $0xe8] sm:$0xff]
    %v1528 = vld [vmem:[%s6 + $0xf0] sm:$0xff]
    %v1529 = vld [vmem:[%s6 + $0xf8] sm:$0xff]
    %v1530 = vld [vmem:[%s6 + $0x100] sm:$0xff]
    %v1531 = vld [vmem:[%s6 + $0x108] sm:$0xff]
    %v1532 = vld [vmem:[%s6 + $0x110] sm:$0xff]
    %v1533 = vld [vmem:[%s6 + $0x118] sm:$0xff]
    %v1534 = vld [vmem:[%s6 + $0x120] sm:$0xff]
    %v1535 = vld [vmem:[%s6 + $0x128] sm:$0xff]
    %v1536 = vld [vmem:[%s6 + $0x130] sm:$0xff]
    %v1537 = vld [vmem:[%s6 + $0x138] sm:$0xff]
    %v1538 = vld [vmem:[%s6 + $0x140] sm:$0xff]
    %v1539 = vld [vmem:[%s6 + $0x148] sm:$0xff]
    %v1540 = vld [vmem:[%s6 + $0x150] sm:$0xff]
    %v1541 = vld [vmem:[%s6 + $0x158] sm:$0xff]
    %v1542 = vld [vmem:[%s6 + $0x160] sm:$0xff]
    %v1543 = vld [vmem:[%s6 + $0x168] sm:$0xff]
    %v1544 = vld [vmem:[%s6 + $0x170] sm:$0xff]
    %v1545 = vld [vmem:[%s6 + $0x178] sm:$0xff]
    %v1546 = vld [vmem:[%s6 + $0x180] sm:$0xff]
    %v1547 = vld [vmem:[%s6 + $0x188] sm:$0xff]
    %v1548 = vld [vmem:[%s6 + $0x190] sm:$0xff]
    %v1549 = vld [vmem:[%s6 + $0x198] sm:$0xff]
    %v1550 = vld [vmem:[%s6 + $0x1a0] sm:$0xff]
    %v1551 = vld [vmem:[%s6 + $0x1a8] sm:$0xff]
    %v1552 = vld [vmem:[%s6 + $0x1b0] sm:$0xff]
    %v1553 = vld [vmem:[%s6 + $0x1b8] sm:$0xff]
    %v1554 = vld [vmem:[%s6 + $0x1c0] sm:$0xff]
    %v1555 = vld [vmem:[%s6 + $0x1c8] sm:$0xff]
    %v1556 = vld [vmem:[%s6 + $0x1d0] sm:$0xff]
    %v1557 = vld [vmem:[%s6 + $0x1d8] sm:$0xff]
    %v1558 = vld [vmem:[%s6 + $0x1e0] sm:$0xff]
    %v1559 = vld [vmem:[%s6 + $0x1e8] sm:$0xff]
    %v1560 = vld [vmem:[%s6 + $0x1f0] sm:$0xff]
    %v1561 = vld [vmem:[%s6 + $0x1f8] sm:$0xff]
    %v1562 = vld [vmem:[%s6 + $0x200] sm:$0xff]
    %v1563 = vld [vmem:[%s6 + $0x208] sm:$0xff]
    %v1564 = vld [vmem:[%s6 + $0x210] sm:$0xff]
    %v1565 = vld [vmem:[%s6 + $0x218] sm:$0xff]
    %v1566 = vld [vmem:[%s6 + $0x220] sm:$0xff]
    %v1567 = vld [vmem:[%s6 + $0x228] sm:$0xff]
    %v1568 = vld [vmem:[%s6 + $0x230] sm:$0xff]
    %v1569 = vld [vmem:[%s6 + $0x238] sm:$0xff]
    %v1570 = vld [vmem:[%s6 + $0x240] sm:$0xff]
    %v1571 = vld [vmem:[%s6 + $0x248] sm:$0xff]
    %v1572 = vld [vmem:[%s6 + $0x250] sm:$0xff]
    %v1573 = vld [vmem:[%s6 + $0x258] sm:$0xff]
    %v1574 = vld [vmem:[%s6 + $0x260] sm:$0xff]
    %v1575 = vld [vmem:[%s6 + $0x268] sm:$0xff]
    %v1576 = vld [vmem:[%s6 + $0x270] sm:$0xff]
    %v1577 = vld [vmem:[%s6 + $0x278] sm:$0xff]
    %v1578 = vld [vmem:[%s6 + $0x280] sm:$0xff]
    %v1579 = vld [vmem:[%s6 + $0x288] sm:$0xff]
    %v1580 = vld [vmem:[%s6 + $0x290] sm:$0xff]
    %v1581 = vld [vmem:[%s6 + $0x298] sm:$0xff]
    %v1582 = vld [vmem:[%s6 + $0x2a0] sm:$0xff]
    %v1583 = vld [vmem:[%s6 + $0x2a8] sm:$0xff]
    %v1584 = vld [vmem:[%s6 + $0x2b0] sm:$0xff]
    %v1585 = vld [vmem:[%s6 + $0x2b8] sm:$0xff]
    %v1586 = vld [vmem:[%s6 + $0x2c0] sm:$0xff]
    %v1587 = vld [vmem:[%s6 + $0x2c8] sm:$0xff]
    %v1588 = vld [vmem:[%s6 + $0x2d0] sm:$0xff]
    %v1589 = vld [vmem:[%s6 + $0x2d8] sm:$0xff]
    %v1590 = vld [vmem:[%s6 + $0x2e0] sm:$0xff]
    %v1591 = vld [vmem:[%s6 + $0x2e8] sm:$0xff]
    %v1592 = vld [vmem:[%s6 + $0x2f0] sm:$0xff]
    %v1593 = vld [vmem:[%s6 + $0x2f8] sm:$0xff]
    %v1594 = vld [vmem:[%s7] sm:$0xff]
    %v1595 = vld [vmem:[%s7 + $0x8] sm:$0xff]
    %v1596 = vld [vmem:[%s7 + $0x10] sm:$0xff]
    %v1597 = vld [vmem:[%s7 + $0x18] sm:$0xff]
    %v1598 = vld [vmem:[%s7 + $0x20] sm:$0xff]
    %v1599 = vld [vmem:[%s7 + $0x28] sm:$0xff]
    %v1600 = vld [vmem:[%s7 + $0x30] sm:$0xff]
    %v1601 = vld [vmem:[%s7 + $0x38] sm:$0xff]
    %v1602 = vld [vmem:[%s7 + $0x40] sm:$0xff]
    %v1603 = vld [vmem:[%s7 + $0x48] sm:$0xff]
    %v1604 = vld [vmem:[%s7 + $0x50] sm:$0xff]
    %v1605 = vld [vmem:[%s7 + $0x58] sm:$0xff]
    %v1606 = vld [vmem:[%s7 + $0x60] sm:$0xff]
    %v1607 = vld [vmem:[%s7 + $0x68] sm:$0xff]
    %v1608 = vld [vmem:[%s7 + $0x70] sm:$0xff]
    %v1609 = vld [vmem:[%s7 + $0x78] sm:$0xff]
    %v1610 = vld [vmem:[%s7 + $0x80] sm:$0xff]
    %v1611 = vld [vmem:[%s7 + $0x88] sm:$0xff]
    %v1612 = vld [vmem:[%s7 + $0x90] sm:$0xff]
    %v1613 = vld [vmem:[%s7 + $0x98] sm:$0xff]
    %v1614 = vld [vmem:[%s7 + $0xa0] sm:$0xff]
    %v1615 = vld [vmem:[%s7 + $0xa8] sm:$0xff]
    %v1616 = vld [vmem:[%s7 + $0xb0] sm:$0xff]
    %v1617 = vld [vmem:[%s7 + $0xb8] sm:$0xff]
    %v1618 = vld [vmem:[%s7 + $0xc0] sm:$0xff]
    %v1619 = vld [vmem:[%s7 + $0xc8] sm:$0xff]
    %v1620 = vld [vmem:[%s7 + $0xd0] sm:$0xff]
    %v1621 = vld [vmem:[%s7 + $0xd8] sm:$0xff]
    %v1622 = vld [vmem:[%s7 + $0xe0] sm:$0xff]
    %v1623 = vld [vmem:[%s7 + $0xe8] sm:$0xff]
    %v1624 = vld [vmem:[%s7 + $0xf0] sm:$0xff]
    %v1625 = vld [vmem:[%s7 + $0xf8] sm:$0xff]
    %v1626 = vld [vmem:[%s7 + $0x100] sm:$0xff]
    %v1627 = vld [vmem:[%s7 + $0x108] sm:$0xff]
    %v1628 = vld [vmem:[%s7 + $0x110] sm:$0xff]
    %v1629 = vld [vmem:[%s7 + $0x118] sm:$0xff]
    %v1630 = vld [vmem:[%s7 + $0x120] sm:$0xff]
    %v1631 = vld [vmem:[%s7 + $0x128] sm:$0xff]
    %v1632 = vld [vmem:[%s7 + $0x130] sm:$0xff]
    %v1633 = vld [vmem:[%s7 + $0x138] sm:$0xff]
    %v1634 = vld [vmem:[%s7 + $0x140] sm:$0xff]
    %v1635 = vld [vmem:[%s7 + $0x148] sm:$0xff]
    %v1636 = vld [vmem:[%s7 + $0x150] sm:$0xff]
    %v1637 = vld [vmem:[%s7 + $0x158] sm:$0xff]
    %v1638 = vld [vmem:[%s7 + $0x160] sm:$0xff]
    %v1639 = vld [vmem:[%s7 + $0x168] sm:$0xff]
    %v1640 = vld [vmem:[%s7 + $0x170] sm:$0xff]
    %v1641 = vld [vmem:[%s7 + $0x178] sm:$0xff]
    %v1642 = vld [vmem:[%s7 + $0x180] sm:$0xff]
    %v1643 = vld [vmem:[%s7 + $0x188] sm:$0xff]
    %v1644 = vld [vmem:[%s7 + $0x190] sm:$0xff]
    %v1645 = vld [vmem:[%s7 + $0x198] sm:$0xff]
    %v1646 = vld [vmem:[%s7 + $0x1a0] sm:$0xff]
    %v1647 = vld [vmem:[%s7 + $0x1a8] sm:$0xff]
    %v1648 = vld [vmem:[%s7 + $0x1b0] sm:$0xff]
    %v1649 = vld [vmem:[%s7 + $0x1b8] sm:$0xff]
    %v1650 = vld [vmem:[%s7 + $0x1c0] sm:$0xff]
    %v1651 = vld [vmem:[%s7 + $0x1c8] sm:$0xff]
    %v1652 = vld [vmem:[%s7 + $0x1d0] sm:$0xff]
    %v1653 = vld [vmem:[%s7 + $0x1d8] sm:$0xff]
    %v1654 = vld [vmem:[%s7 + $0x1e0] sm:$0xff]
    %v1655 = vld [vmem:[%s7 + $0x1e8] sm:$0xff]
    %v1656 = vld [vmem:[%s7 + $0x1f0] sm:$0xff]
    %v1657 = vld [vmem:[%s7 + $0x1f8] sm:$0xff]
    %v1658 = vld [vmem:[%s7 + $0x200] sm:$0xff]
    %v1659 = vld [vmem:[%s7 + $0x208] sm:$0xff]
    %v1660 = vld [vmem:[%s7 + $0x210] sm:$0xff]
    %v1661 = vld [vmem:[%s7 + $0x218] sm:$0xff]
    %v1662 = vld [vmem:[%s7 + $0x220] sm:$0xff]
    %v1663 = vld [vmem:[%s7 + $0x228] sm:$0xff]
    %v1664 = vld [vmem:[%s7 + $0x230] sm:$0xff]
    %v1665 = vld [vmem:[%s7 + $0x238] sm:$0xff]
    %v1666 = vld [vmem:[%s7 + $0x240] sm:$0xff]
    %v1667 = vld [vmem:[%s7 + $0x248] sm:$0xff]
    %v1668 = vld [vmem:[%s7 + $0x250] sm:$0xff]
    %v1669 = vld [vmem:[%s7 + $0x258] sm:$0xff]
    %v1670 = vld [vmem:[%s7 + $0x260] sm:$0xff]
    %v1671 = vld [vmem:[%s7 + $0x268] sm:$0xff]
    %v1672 = vld [vmem:[%s7 + $0x270] sm:$0xff]
    %v1673 = vld [vmem:[%s7 + $0x278] sm:$0xff]
    %v1674 = vld [vmem:[%s7 + $0x280] sm:$0xff]
    %v1675 = vld [vmem:[%s7 + $0x288] sm:$0xff]
    %v1676 = vld [vmem:[%s7 + $0x290] sm:$0xff]
    %v1677 = vld [vmem:[%s7 + $0x298] sm:$0xff]
    %v1678 = vld [vmem:[%s7 + $0x2a0] sm:$0xff]
    %v1679 = vld [vmem:[%s7 + $0x2a8] sm:$0xff]
    %v1680 = vld [vmem:[%s7 + $0x2b0] sm:$0xff]
    %v1681 = vld [vmem:[%s7 + $0x2b8] sm:$0xff]
    %v1682 = vld [vmem:[%s7 + $0x2c0] sm:$0xff]
    %v1683 = vld [vmem:[%s7 + $0x2c8] sm:$0xff]
    %v1684 = vld [vmem:[%s7 + $0x2d0] sm:$0xff]
    %v1685 = vld [vmem:[%s7 + $0x2d8] sm:$0xff]
    %v1686 = vld [vmem:[%s7 + $0x2e0] sm:$0xff]
    %v1687 = vld [vmem:[%s7 + $0x2e8] sm:$0xff]
    %v1688 = vld [vmem:[%s7 + $0x2f0] sm:$0xff]
    %v1689 = vld [vmem:[%s7 + $0x2f8] sm:$0xff]
    %1690 = vmatpush.msra.mxu0 %v1609
    %1691 = vmatpush.msra.mxu0 %v1608
    %1692 = vmatpush.msra.mxu0 %v1607
    %1693 = vmatpush.msra.mxu0 %v1606
    %1694 = vmatpush.msra.mxu0 %v1605
    %1695 = vmatpush.msra.mxu0 %v1604
    %1696 = vmatpush.msra.mxu0 %v1603
    %1697 = vmatpush.msra.mxu0 %v1602
    %1698 = vmatpush.msra.mxu0 %v1601
    %1699 = vmatpush.msra.mxu0 %v1600
    %1700 = vmatpush.msra.mxu0 %v1599
    %1701 = vmatpush.msra.mxu0 %v1598
    %1702 = vmatpush.msra.mxu0 %v1597
    %1703 = vmatpush.msra.mxu0 %v1596
    %1704 = vmatpush.msra.mxu0 %v1595
    %1705 = vmatpush.msra.mxu0 %v1594
    %1706 = vmatmul.f32.gmra.mxu0 %v1492
    %v1707 = vpop.f32.mrf.mxu0
    %v1708 = vadd.f32 0.0, %v1707
    %1709 = vdwg.mxu0
    %1710 = vmatpush.msra.mxu0 %v1625
    %1711 = vmatpush.msra.mxu0 %v1624
    %1712 = vmatpush.msra.mxu0 %v1623
    %1713 = vmatpush.msra.mxu0 %v1622
    %1714 = vmatpush.msra.mxu0 %v1621
    %1715 = vmatpush.msra.mxu0 %v1620
    %1716 = vmatpush.msra.mxu0 %v1619
    %1717 = vmatpush.msra.mxu0 %v1618
    %1718 = vmatpush.msra.mxu0 %v1617
    %1719 = vmatpush.msra.mxu0 %v1616
    %1720 = vmatpush.msra.mxu0 %v1615
    %1721 = vmatpush.msra.mxu0 %v1614
    %1722 = vmatpush.msra.mxu0 %v1613
    %1723 = vmatpush.msra.mxu0 %v1612
    %1724 = vmatpush.msra.mxu0 %v1611
    %1725 = vmatpush.msra.mxu0 %v1610
    %1726 = vmatmul.f32.gmra.mxu0 %v1493
    %v1727 = vpop.f32.mrf.mxu0
    %v1728 = vadd.f32 %v1708, %v1727
    %1729 = vdwg.mxu0
    %1730 = vmatpush.msra.mxu0 %v1641
    %1731 = vmatpush.msra.mxu0 %v1640
    %1732 = vmatpush.msra.mxu0 %v1639
    %1733 = vmatpush.msra.mxu0 %v1638
    %1734 = vmatpush.msra.mxu0 %v1637
    %1735 = vmatpush.msra.mxu0 %v1636
    %1736 = vmatpush.msra.mxu0 %v1635
    %1737 = vmatpush.msra.mxu0 %v1634
    %1738 = vmatpush.msra.mxu0 %v1633
    %1739 = vmatpush.msra.mxu0 %v1632
    %1740 = vmatpush.msra.mxu0 %v1631
    %1741 = vmatpush.msra.mxu0 %v1630
    %1742 = vmatpush.msra.mxu0 %v1629
    %1743 = vmatpush.msra.mxu0 %v1628
    %1744 = vmatpush.msra.mxu0 %v1627
    %1745 = vmatpush.msra.mxu0 %v1626
    %1746 = vmatmul.f32.gmra.mxu0 %v1494
    %v1747 = vpop.f32.mrf.mxu0
    %v1748 = vadd.f32 %v1728, %v1747
    %1749 = vdwg.mxu0
    %1750 = vmatpush.msra.mxu0 %v1657
    %1751 = vmatpush.msra.mxu0 %v1656
    %1752 = vmatpush.msra.mxu0 %v1655
    %1753 = vmatpush.msra.mxu0 %v1654
    %1754 = vmatpush.msra.mxu0 %v1653
    %1755 = vmatpush.msra.mxu0 %v1652
    %1756 = vmatpush.msra.mxu0 %v1651
    %1757 = vmatpush.msra.mxu0 %v1650
    %1758 = vmatpush.msra.mxu0 %v1649
    %1759 = vmatpush.msra.mxu0 %v1648
    %1760 = vmatpush.msra.mxu0 %v1647
    %1761 = vmatpush.msra.mxu0 %v1646
    %1762 = vmatpush.msra.mxu0 %v1645
    %1763 = vmatpush.msra.mxu0 %v1644
    %1764 = vmatpush.msra.mxu0 %v1643
    %1765 = vmatpush.msra.mxu0 %v1642
    %1766 = vmatmul.f32.gmra.mxu0 %v1495
    %v1767 = vpop.f32.mrf.mxu0
    %v1768 = vadd.f32 %v1748, %v1767
    %1769 = vdwg.mxu0
    %1770 = vmatpush.msra.mxu0 %v1673
    %1771 = vmatpush.msra.mxu0 %v1672
    %1772 = vmatpush.msra.mxu0 %v1671
    %1773 = vmatpush.msra.mxu0 %v1670
    %1774 = vmatpush.msra.mxu0 %v1669
    %1775 = vmatpush.msra.mxu0 %v1668
    %1776 = vmatpush.msra.mxu0 %v1667
    %1777 = vmatpush.msra.mxu0 %v1666
    %1778 = vmatpush.msra.mxu0 %v1665
    %1779 = vmatpush.msra.mxu0 %v1664
    %1780 = vmatpush.msra.mxu0 %v1663
    %1781 = vmatpush.msra.mxu0 %v1662
    %1782 = vmatpush.msra.mxu0 %v1661
    %1783 = vmatpush.msra.mxu0 %v1660
    %1784 = vmatpush.msra.mxu0 %v1659
    %1785 = vmatpush.msra.mxu0 %v1658
    %1786 = vmatmul.f32.gmra.mxu0 %v1496
    %v1787 = vpop.f32.mrf.mxu0
    %v1788 = vadd.f32 %v1768, %v1787
    %1789 = vdwg.mxu0
    %1790 = vmatpush.msra.mxu0 %v1689
    %1791 = vmatpush.msra.mxu0 %v1688
    %1792 = vmatpush.msra.mxu0 %v1687
    %1793 = vmatpush.msra.mxu0 %v1686
    %1794 = vmatpush.msra.mxu0 %v1685
    %1795 = vmatpush.msra.mxu0 %v1684
    %1796 = vmatpush.msra.mxu0 %v1683
    %1797 = vmatpush.msra.mxu0 %v1682
    %1798 = vmatpush.msra.mxu0 %v1681
    %1799 = vmatpush.msra.mxu0 %v1680
    %1800 = vmatpush.msra.mxu0 %v1679
    %1801 = vmatpush.msra.mxu0 %v1678
    %1802 = vmatpush.msra.mxu0 %v1677
    %1803 = vmatpush.msra.mxu0 %v1676
    %1804 = vmatpush.msra.mxu0 %v1675
    %1805 = vmatpush.msra.mxu0 %v1674
    %1806 = vmatmul.f32.gmra.mxu0 %v1497
    %v1807 = vpop.f32.mrf.mxu0
    %v1808 = vadd.f32 %v1788, %v1807
    %1809 = vdwg.mxu0
    %1810 = vmatpush.msra.mxu0 %v1513
    %1811 = vmatpush.msra.mxu0 %v1512
    %1812 = vmatpush.msra.mxu0 %v1511
    %1813 = vmatpush.msra.mxu0 %v1510
    %1814 = vmatpush.msra.mxu0 %v1509
    %1815 = vmatpush.msra.mxu0 %v1508
    %1816 = vmatpush.msra.mxu0 %v1507
    %1817 = vmatpush.msra.mxu0 %v1506
    %1818 = vmatpush.msra.mxu0 %v1505
    %1819 = vmatpush.msra.mxu0 %v1504
    %1820 = vmatpush.msra.mxu0 %v1503
    %1821 = vmatpush.msra.mxu0 %v1502
    %1822 = vmatpush.msra.mxu0 %v1501
    %1823 = vmatpush.msra.mxu0 %v1500
    %1824 = vmatpush.msra.mxu0 %v1499
    %1825 = vmatpush.msra.mxu0 %v1498
    %1826 = vmatmul.f32.gmra.mxu0 %v884
    %v1827 = vpop.f32.mrf.mxu0
    %v1828 = vadd.f32 %v1808, %v1827
    %1829 = vdwg.mxu0
    %1830 = vmatpush.msra.mxu0 %v1529
    %1831 = vmatpush.msra.mxu0 %v1528
    %1832 = vmatpush.msra.mxu0 %v1527
    %1833 = vmatpush.msra.mxu0 %v1526
    %1834 = vmatpush.msra.mxu0 %v1525
    %1835 = vmatpush.msra.mxu0 %v1524
    %1836 = vmatpush.msra.mxu0 %v1523
    %1837 = vmatpush.msra.mxu0 %v1522
    %1838 = vmatpush.msra.mxu0 %v1521
    %1839 = vmatpush.msra.mxu0 %v1520
    %1840 = vmatpush.msra.mxu0 %v1519
    %1841 = vmatpush.msra.mxu0 %v1518
    %1842 = vmatpush.msra.mxu0 %v1517
    %1843 = vmatpush.msra.mxu0 %v1516
    %1844 = vmatpush.msra.mxu0 %v1515
    %1845 = vmatpush.msra.mxu0 %v1514
    %1846 = vmatmul.f32.gmra.mxu0 %v1004
    %v1847 = vpop.f32.mrf.mxu0
    %v1848 = vadd.f32 %v1828, %v1847
    %1849 = vdwg.mxu0
    %1850 = vmatpush.msra.mxu0 %v1545
    %1851 = vmatpush.msra.mxu0 %v1544
    %1852 = vmatpush.msra.mxu0 %v1543
    %1853 = vmatpush.msra.mxu0 %v1542
    %1854 = vmatpush.msra.mxu0 %v1541
    %1855 = vmatpush.msra.mxu0 %v1540
    %1856 = vmatpush.msra.mxu0 %v1539
    %1857 = vmatpush.msra.mxu0 %v1538
    %1858 = vmatpush.msra.mxu0 %v1537
    %1859 = vmatpush.msra.mxu0 %v1536
    %1860 = vmatpush.msra.mxu0 %v1535
    %1861 = vmatpush.msra.mxu0 %v1534
    %1862 = vmatpush.msra.mxu0 %v1533
    %1863 = vmatpush.msra.mxu0 %v1532
    %1864 = vmatpush.msra.mxu0 %v1531
    %1865 = vmatpush.msra.mxu0 %v1530
    %1866 = vmatmul.f32.gmra.mxu0 %v1124
    %v1867 = vpop.f32.mrf.mxu0
    %v1868 = vadd.f32 %v1848, %v1867
    %1869 = vdwg.mxu0
    %1870 = vmatpush.msra.mxu0 %v1561
    %1871 = vmatpush.msra.mxu0 %v1560
    %1872 = vmatpush.msra.mxu0 %v1559
    %1873 = vmatpush.msra.mxu0 %v1558
    %1874 = vmatpush.msra.mxu0 %v1557
    %1875 = vmatpush.msra.mxu0 %v1556
    %1876 = vmatpush.msra.mxu0 %v1555
    %1877 = vmatpush.msra.mxu0 %v1554
    %1878 = vmatpush.msra.mxu0 %v1553
    %1879 = vmatpush.msra.mxu0 %v1552
    %1880 = vmatpush.msra.mxu0 %v1551
    %1881 = vmatpush.msra.mxu0 %v1550
    %1882 = vmatpush.msra.mxu0 %v1549
    %1883 = vmatpush.msra.mxu0 %v1548
    %1884 = vmatpush.msra.mxu0 %v1547
    %1885 = vmatpush.msra.mxu0 %v1546
    %1886 = vmatmul.f32.gmra.mxu0 %v1244
    %v1887 = vpop.f32.mrf.mxu0
    %v1888 = vadd.f32 %v1868, %v1887
    %1889 = vdwg.mxu0
    %1890 = vmatpush.msra.mxu0 %v1577
    %1891 = vmatpush.msra.mxu0 %v1576
    %1892 = vmatpush.msra.mxu0 %v1575
    %1893 = vmatpush.msra.mxu0 %v1574
    %1894 = vmatpush.msra.mxu0 %v1573
    %1895 = vmatpush.msra.mxu0 %v1572
    %1896 = vmatpush.msra.mxu0 %v1571
    %1897 = vmatpush.msra.mxu0 %v1570
    %1898 = vmatpush.msra.mxu0 %v1569
    %1899 = vmatpush.msra.mxu0 %v1568
    %1900 = vmatpush.msra.mxu0 %v1567
    %1901 = vmatpush.msra.mxu0 %v1566
    %1902 = vmatpush.msra.mxu0 %v1565
    %1903 = vmatpush.msra.mxu0 %v1564
    %1904 = vmatpush.msra.mxu0 %v1563
    %1905 = vmatpush.msra.mxu0 %v1562
    %1906 = vmatmul.f32.gmra.mxu0 %v1364
    %v1907 = vpop.f32.mrf.mxu0
    %v1908 = vadd.f32 %v1888, %v1907
    %1909 = vdwg.mxu0
    %1910 = vmatpush.msra.mxu0 %v1593
    %1911 = vmatpush.msra.mxu0 %v1592
    %1912 = vmatpush.msra.mxu0 %v1591
    %1913 = vmatpush.msra.mxu0 %v1590
    %1914 = vmatpush.msra.mxu0 %v1589
    %1915 = vmatpush.msra.mxu0 %v1588
    %1916 = vmatpush.msra.mxu0 %v1587
    %1917 = vmatpush.msra.mxu0 %v1586
    %1918 = vmatpush.msra.mxu0 %v1585
    %1919 = vmatpush.msra.mxu0 %v1584
    %1920 = vmatpush.msra.mxu0 %v1583
    %1921 = vmatpush.msra.mxu0 %v1582
    %1922 = vmatpush.msra.mxu0 %v1581
    %1923 = vmatpush.msra.mxu0 %v1580
    %1924 = vmatpush.msra.mxu0 %v1579
    %1925 = vmatpush.msra.mxu0 %v1578
    %1926 = vmatmul.f32.gmra.mxu0 %v1484
    %v1927 = vpop.f32.mrf.mxu0
    %v1928 = vadd.f32 %v1908, %v1927
    %1929 = vdwg.mxu0
    %v1930 = vld [vmem:[#allocation13] sm:$0x1]
    %v1932 = vperm.slane %v1930, 0
    %v1934 = vadd.f32 %v1928, %v1932
    %v1935 = vmax.f32 %v1934, 0.0
    %v1936 = vld [vmem:[%s9] sm:$0xff]
    %v1937 = vld [vmem:[%s9 + $0x8] sm:$0xff]
    %v1938 = vld [vmem:[%s9 + $0x10] sm:$0xff]
    %v1939 = vld [vmem:[%s9 + $0x18] sm:$0xff]
    %v1940 = vld [vmem:[%s9 + $0x20] sm:$0xff]
    %v1941 = vld [vmem:[%s9 + $0x28] sm:$0xff]
    %v1942 = vld [vmem:[%s9 + $0x30] sm:$0xff]
    %v1943 = vld [vmem:[%s9 + $0x38] sm:$0xff]
    %v1944 = vld [vmem:[%s9 + $0x40] sm:$0xff]
    %v1945 = vld [vmem:[%s9 + $0x48] sm:$0xff]
    %v1946 = vld [vmem:[%s9 + $0x50] sm:$0xff]
    %v1947 = vld [vmem:[%s9 + $0x58] sm:$0xff]
    %v1948 = vld [vmem:[#allocation15] sm:$0x1]
    %v1950 = vperm.slane %v1948, 0
    %vm1952 = vcmask 785408
    %v1954 = vsel %vm1952, %v1935, 0
    %1956 = vmatpush.msra.mxu0 0.0
    %1957 = vmatpush.msra.mxu0 0.0
    %1958 = vmatpush.msra.mxu0 0.0
    %1959 = vmatpush.msra.mxu0 0.0
    %1960 = vmatpush.msra.mxu0 %v1947
    %1961 = vmatpush.msra.mxu0 %v1946
    %1962 = vmatpush.msra.mxu0 %v1945
    %1963 = vmatpush.msra.mxu0 %v1944
    %1964 = vmatpush.msra.mxu0 %v1943
    %1965 = vmatpush.msra.mxu0 %v1942
    %1966 = vmatpush.msra.mxu0 %v1941
    %1967 = vmatpush.msra.mxu0 %v1940
    %1968 = vmatpush.msra.mxu0 %v1939
    %1969 = vmatpush.msra.mxu0 %v1938
    %1970 = vmatpush.msra.mxu0 %v1937
    %1971 = vmatpush.msra.mxu0 %v1936
    %1972 = vmatmul.f32.gmra.mxu0 %v1954
    %v1973 = vpop.f32.mrf.mxu0
    %v1974 = vadd.f32 %v1950, %v1973
    %1975 = vdwg.mxu0
    %v1976 = vld [vmem:[#allocation16] sm:$0x1]
    %v1978 = vperm.slane %v1976, 0
    %v1980 = vadd.f32 %v1974, %v1978
    %vm1981 = vcmask 64512
    %1982 = vst.msk [vmem:[#allocation19] sm:$0xff] %vm1981, %v1980
    %v1983 = vld [vmem:[#allocation9] sm:$0xff]
    %v1984 = vld [vmem:[#allocation9 + $0x8] sm:$0xff]
    %v1985 = vld [vmem:[#allocation9 + $0x10] sm:$0xff]
    %v1986 = vld [vmem:[#allocation9 + $0x18] sm:$0xff]
    %v1987 = vld [vmem:[#allocation9 + $0x20] sm:$0xff]
    %v1988 = vld [vmem:[#allocation9 + $0x28] sm:$0xff]
    %v1989 = vmul.f32 %v884, %v884
    %v1990 = vmul.f32 %v1004, %v1004
    %v1991 = vmul.f32 %v1124, %v1124
    %v1992 = vmul.f32 %v1244, %v1244
    %v1993 = vmul.f32 %v1364, %v1364
    %v1994 = vmul.f32 %v1484, %v1484
    %v1995 = vadd.f32 %v1989, %v1990
    %v1996 = vadd.f32 %v1995, %v1991
    %v1997 = vadd.f32 %v1996, %v1992
    %v1998 = vadd.f32 %v1997, %v1993
    %v1999 = vadd.f32 %v1998, %v1994
    %2000 = vadd.xlane.f32.xlu0 %v1999
    %v2001 = vpop.xlane.xlu0 %2000
    %v2002 = vmax.f32 %v2001, 1e-24
    %v2003 = vrsqrt.pop %v2002
    %v2004 = vmul.f32 %v2003, %v2002
    %v2005 = vmul.f32 %v2004, %v2003
    %v2006 = vmul.f32 0.5, %v2005
    %v2007 = vsub.f32 1.5, %v2006
    %v2008 = vmul.f32 %v2003, %v2007
    %vm2009 = vweird.f32 %v2002
    %vm2010 = vweird.f32 %v2003
    %vm2011 = vmor %vm2009, %vm2010
    %v2012 = vsel %vm2011, %v2003, %v2008
    %v2013 = vmul.f32 %v884, %v2012
    %v2014 = vmul.f32 %v1004, %v2012
    %v2015 = vmul.f32 %v1124, %v2012
    %v2016 = vmul.f32 %v1244, %v2012
    %v2017 = vmul.f32 %v1364, %v2012
    %v2018 = vmul.f32 %v1484, %v2012
    %s2019 = sld [smem:[#allocation2]]
    %v2020 = vmul.f32 %v1492, %v1492
    %v2021 = vmul.f32 %v1493, %v1493
    %v2022 = vmul.f32 %v1494, %v1494
    %v2023 = vmul.f32 %v1495, %v1495
    %v2024 = vmul.f32 %v1496, %v1496
    %v2025 = vmul.f32 %v1497, %v1497
    %v2026 = vadd.f32 %v2020, %v2021
    %v2027 = vadd.f32 %v2026, %v2022
    %v2028 = vadd.f32 %v2027, %v2023
    %v2029 = vadd.f32 %v2028, %v2024
    %v2030 = vadd.f32 %v2029, %v2025
    %2031 = vadd.xlane.f32.xlu0 %v2030
    %v2032 = vpop.xlane.xlu0 %2031
    %v2033 = vmax.f32 %v2032, 1e-24
    %v2034 = vrsqrt.pop %v2033
    %v2035 = vmul.f32 %v2034, %v2033
    %v2036 = vmul.f32 %v2035, %v2034
    %v2037 = vmul.f32 0.5, %v2036
    %v2038 = vsub.f32 1.5, %v2037
    %v2039 = vmul.f32 %v2034, %v2038
    %vm2040 = vweird.f32 %v2033
    %vm2041 = vweird.f32 %v2034
    %vm2042 = vmor %vm2040, %vm2041
    %v2043 = vsel %vm2042, %v2034, %v2039
    %v2044 = vstv %s2019
    %v2045 = vmul.f32 %v2044, %v2043
    %v2046 = vmul.f32 %v1492, %v2045
    %v2047 = vmul.f32 %v1493, %v2045
    %v2048 = vmul.f32 %v1494, %v2045
    %v2049 = vmul.f32 %v1495, %v2045
    %v2050 = vmul.f32 %v1496, %v2045
    %v2051 = vmul.f32 %v1497, %v2045
    %s2052 = sld [smem:[#allocation2 + $0x1]]
    %v2053 = vmul.f32 %v1983, %v1983
    %v2054 = vmul.f32 %v1984, %v1984
    %v2055 = vmul.f32 %v1985, %v1985
    %v2056 = vmul.f32 %v1986, %v1986
    %v2057 = vmul.f32 %v1987, %v1987
    %v2058 = vmul.f32 %v1988, %v1988
    %v2059 = vadd.f32 %v2053, %v2054
    %v2060 = vadd.f32 %v2059, %v2055
    %v2061 = vadd.f32 %v2060, %v2056
    %v2062 = vadd.f32 %v2061, %v2057
    %v2063 = vadd.f32 %v2062, %v2058
    %2064 = vadd.xlane.f32.xlu0 %v2063
    %v2065 = vpop.xlane.xlu0 %2064
    %v2066 = vmax.f32 %v2065, 1e-24
    %v2067 = vrsqrt.pop %v2066
    %v2068 = vmul.f32 %v2067, %v2066
    %v2069 = vmul.f32 %v2068, %v2067
    %v2070 = vmul.f32 0.5, %v2069
    %v2071 = vsub.f32 1.5, %v2070
    %v2072 = vmul.f32 %v2067, %v2071
    %vm2073 = vweird.f32 %v2066
    %vm2074 = vweird.f32 %v2067
    %vm2075 = vmor %vm2073, %vm2074
    %v2076 = vsel %vm2075, %v2067, %v2072
    %v2077 = vstv %s2052
    %v2078 = vmul.f32 %v2077, %v2076
    %v2079 = vmul.f32 %v1983, %v2078
    %v2080 = vmul.f32 %v1984, %v2078
    %v2081 = vmul.f32 %v1985, %v2078
    %v2082 = vmul.f32 %v1986, %v2078
    %v2083 = vmul.f32 %v1987, %v2078
    %v2084 = vmul.f32 %v1988, %v2078
    %2085 = vmatpush.xpose.msra.mxu0 0.0
    %2086 = vmatpush.xpose.msra.mxu0 0.0
    %2087 = vmatpush.xpose.msra.mxu0 0.0
    %2088 = vmatpush.xpose.msra.mxu0 0.0
    %2089 = vmatpush.xpose.msra.mxu0 0.0
    %2090 = vmatpush.xpose.msra.mxu0 0.0
    %2091 = vmatpush.xpose.msra.mxu0 0.0
    %2092 = vmatpush.xpose.msra.mxu0 0.0
    %2093 = vmatpush.xpose.msra.mxu0 0.0
    %2094 = vmatpush.xpose.msra.mxu0 0.0
    %2095 = vmatpush.xpose.msra.mxu0 0.0
    %2096 = vmatpush.xpose.msra.mxu0 0.0
    %2097 = vmatpush.xpose.msra.mxu0 0.0
    %2098 = vmatpush.xpose.msra.mxu0 0.0
    %2099 = vmatpush.xpose.msra.mxu0 0.0
    %2100 = vmatpush.xpose.msra.mxu0 %v2046
    %2101 = vmatmul.f32.gmra.mxu0 %v2013
    %v2102 = vpop.f32.mrf.mxu0
    %v2103 = vadd.f32 0.0, %v2102
    %2104 = vdwg.mxu0
    %2105 = vmatpush.xpose.msra.mxu0 0.0
    %2106 = vmatpush.xpose.msra.mxu0 0.0
    %2107 = vmatpush.xpose.msra.mxu0 0.0
    %2108 = vmatpush.xpose.msra.mxu0 0.0
    %2109 = vmatpush.xpose.msra.mxu0 0.0
    %2110 = vmatpush.xpose.msra.mxu0 0.0
    %2111 = vmatpush.xpose.msra.mxu0 0.0
    %2112 = vmatpush.xpose.msra.mxu0 0.0
    %2113 = vmatpush.xpose.msra.mxu0 0.0
    %2114 = vmatpush.xpose.msra.mxu0 0.0
    %2115 = vmatpush.xpose.msra.mxu0 0.0
    %2116 = vmatpush.xpose.msra.mxu0 0.0
    %2117 = vmatpush.xpose.msra.mxu0 0.0
    %2118 = vmatpush.xpose.msra.mxu0 0.0
    %2119 = vmatpush.xpose.msra.mxu0 0.0
    %2120 = vmatpush.xpose.msra.mxu0 %v2047
    %2121 = vmatmul.f32.gmra.mxu0 %v2014
    %v2122 = vpop.f32.mrf.mxu0
    %v2123 = vadd.f32 %v2103, %v2122
    %2124 = vdwg.mxu0
    %2125 = vmatpush.xpose.msra.mxu0 0.0
    %2126 = vmatpush.xpose.msra.mxu0 0.0
    %2127 = vmatpush.xpose.msra.mxu0 0.0
    %2128 = vmatpush.xpose.msra.mxu0 0.0
    %2129 = vmatpush.xpose.msra.mxu0 0.0
    %2130 = vmatpush.xpose.msra.mxu0 0.0
    %2131 = vmatpush.xpose.msra.mxu0 0.0
    %2132 = vmatpush.xpose.msra.mxu0 0.0
    %2133 = vmatpush.xpose.msra.mxu0 0.0
    %2134 = vmatpush.xpose.msra.mxu0 0.0
    %2135 = vmatpush.xpose.msra.mxu0 0.0
    %2136 = vmatpush.xpose.msra.mxu0 0.0
    %2137 = vmatpush.xpose.msra.mxu0 0.0
    %2138 = vmatpush.xpose.msra.mxu0 0.0
    %2139 = vmatpush.xpose.msra.mxu0 0.0
    %2140 = vmatpush.xpose.msra.mxu0 %v2048
    %2141 = vmatmul.f32.gmra.mxu0 %v2015
    %v2142 = vpop.f32.mrf.mxu0
    %v2143 = vadd.f32 %v2123, %v2142
    %2144 = vdwg.mxu0
    %2145 = vmatpush.xpose.msra.mxu0 0.0
    %2146 = vmatpush.xpose.msra.mxu0 0.0
    %2147 = vmatpush.xpose.msra.mxu0 0.0
    %2148 = vmatpush.xpose.msra.mxu0 0.0
    %2149 = vmatpush.xpose.msra.mxu0 0.0
    %2150 = vmatpush.xpose.msra.mxu0 0.0
    %2151 = vmatpush.xpose.msra.mxu0 0.0
    %2152 = vmatpush.xpose.msra.mxu0 0.0
    %2153 = vmatpush.xpose.msra.mxu0 0.0
    %2154 = vmatpush.xpose.msra.mxu0 0.0
    %2155 = vmatpush.xpose.msra.mxu0 0.0
    %2156 = vmatpush.xpose.msra.mxu0 0.0
    %2157 = vmatpush.xpose.msra.mxu0 0.0
    %2158 = vmatpush.xpose.msra.mxu0 0.0
    %2159 = vmatpush.xpose.msra.mxu0 0.0
    %2160 = vmatpush.xpose.msra.mxu0 %v2049
    %2161 = vmatmul.f32.gmra.mxu0 %v2016
    %v2162 = vpop.f32.mrf.mxu0
    %v2163 = vadd.f32 %v2143, %v2162
    %2164 = vdwg.mxu0
    %2165 = vmatpush.xpose.msra.mxu0 0.0
    %2166 = vmatpush.xpose.msra.mxu0 0.0
    %2167 = vmatpush.xpose.msra.mxu0 0.0
    %2168 = vmatpush.xpose.msra.mxu0 0.0
    %2169 = vmatpush.xpose.msra.mxu0 0.0
    %2170 = vmatpush.xpose.msra.mxu0 0.0
    %2171 = vmatpush.xpose.msra.mxu0 0.0
    %2172 = vmatpush.xpose.msra.mxu0 0.0
    %2173 = vmatpush.xpose.msra.mxu0 0.0
    %2174 = vmatpush.xpose.msra.mxu0 0.0
    %2175 = vmatpush.xpose.msra.mxu0 0.0
    %2176 = vmatpush.xpose.msra.mxu0 0.0
    %2177 = vmatpush.xpose.msra.mxu0 0.0
    %2178 = vmatpush.xpose.msra.mxu0 0.0
    %2179 = vmatpush.xpose.msra.mxu0 0.0
    %2180 = vmatpush.xpose.msra.mxu0 %v2050
    %2181 = vmatmul.f32.gmra.mxu0 %v2017
    %v2182 = vpop.f32.mrf.mxu0
    %v2183 = vadd.f32 %v2163, %v2182
    %2184 = vdwg.mxu0
    %2185 = vmatpush.xpose.msra.mxu0 0.0
    %2186 = vmatpush.xpose.msra.mxu0 0.0
    %2187 = vmatpush.xpose.msra.mxu0 0.0
    %2188 = vmatpush.xpose.msra.mxu0 0.0
    %2189 = vmatpush.xpose.msra.mxu0 0.0
    %2190 = vmatpush.xpose.msra.mxu0 0.0
    %2191 = vmatpush.xpose.msra.mxu0 0.0
    %2192 = vmatpush.xpose.msra.mxu0 0.0
    %2193 = vmatpush.xpose.msra.mxu0 0.0
    %2194 = vmatpush.xpose.msra.mxu0 0.0
    %2195 = vmatpush.xpose.msra.mxu0 0.0
    %2196 = vmatpush.xpose.msra.mxu0 0.0
    %2197 = vmatpush.xpose.msra.mxu0 0.0
    %2198 = vmatpush.xpose.msra.mxu0 0.0
    %2199 = vmatpush.xpose.msra.mxu0 0.0
    %2200 = vmatpush.xpose.msra.mxu0 %v2051
    %2201 = vmatmul.f32.gmra.mxu0 %v2018
    %v2202 = vpop.f32.mrf.mxu0
    %v2203 = vadd.f32 %v2183, %v2202
    %2204 = vdwg.mxu0
    %2205 = vst.msk [vmem:[#allocation21] sm:$0xff] %vm1981, %v2203
    %2206 = vmatpush.xpose.msra.mxu0 0.0
    %2207 = vmatpush.xpose.msra.mxu0 0.0
    %2208 = vmatpush.xpose.msra.mxu0 0.0
    %2209 = vmatpush.xpose.msra.mxu0 0.0
    %2210 = vmatpush.xpose.msra.mxu0 0.0
    %2211 = vmatpush.xpose.msra.mxu0 0.0
    %2212 = vmatpush.xpose.msra.mxu0 0.0
    %2213 = vmatpush.xpose.msra.mxu0 0.0
    %2214 = vmatpush.xpose.msra.mxu0 0.0
    %2215 = vmatpush.xpose.msra.mxu0 0.0
    %2216 = vmatpush.xpose.msra.mxu0 0.0
    %2217 = vmatpush.xpose.msra.mxu0 0.0
    %2218 = vmatpush.xpose.msra.mxu0 0.0
    %2219 = vmatpush.xpose.msra.mxu0 0.0
    %2220 = vmatpush.xpose.msra.mxu0 0.0
    %2221 = vmatpush.xpose.msra.mxu0 %v2079
    %2222 = vmatmul.f32.gmra.mxu0 %v2013
    %v2223 = vpop.f32.mrf.mxu0
    %v2224 = vadd.f32 0.0, %v2223
    %2225 = vdwg.mxu0
    %2226 = vmatpush.xpose.msra.mxu0 0.0
    %2227 = vmatpush.xpose.msra.mxu0 0.0
    %2228 = vmatpush.xpose.msra.mxu0 0.0
    %2229 = vmatpush.xpose.msra.mxu0 0.0
    %2230 = vmatpush.xpose.msra.mxu0 0.0
    %2231 = vmatpush.xpose.msra.mxu0 0.0
    %2232 = vmatpush.xpose.msra.mxu0 0.0
    %2233 = vmatpush.xpose.msra.mxu0 0.0
    %2234 = vmatpush.xpose.msra.mxu0 0.0
    %2235 = vmatpush.xpose.msra.mxu0 0.0
    %2236 = vmatpush.xpose.msra.mxu0 0.0
    %2237 = vmatpush.xpose.msra.mxu0 0.0
    %2238 = vmatpush.xpose.msra.mxu0 0.0
    %2239 = vmatpush.xpose.msra.mxu0 0.0
    %2240 = vmatpush.xpose.msra.mxu0 0.0
    %2241 = vmatpush.xpose.msra.mxu0 %v2080
    %2242 = vmatmul.f32.gmra.mxu0 %v2014
    %v2243 = vpop.f32.mrf.mxu0
    %v2244 = vadd.f32 %v2224, %v2243
    %2245 = vdwg.mxu0
    %2246 = vmatpush.xpose.msra.mxu0 0.0
    %2247 = vmatpush.xpose.msra.mxu0 0.0
    %2248 = vmatpush.xpose.msra.mxu0 0.0
    %2249 = vmatpush.xpose.msra.mxu0 0.0
    %2250 = vmatpush.xpose.msra.mxu0 0.0
    %2251 = vmatpush.xpose.msra.mxu0 0.0
    %2252 = vmatpush.xpose.msra.mxu0 0.0
    %2253 = vmatpush.xpose.msra.mxu0 0.0
    %2254 = vmatpush.xpose.msra.mxu0 0.0
    %2255 = vmatpush.xpose.msra.mxu0 0.0
    %2256 = vmatpush.xpose.msra.mxu0 0.0
    %2257 = vmatpush.xpose.msra.mxu0 0.0
    %2258 = vmatpush.xpose.msra.mxu0 0.0
    %2259 = vmatpush.xpose.msra.mxu0 0.0
    %2260 = vmatpush.xpose.msra.mxu0 0.0
    %2261 = vmatpush.xpose.msra.mxu0 %v2081
    %2262 = vmatmul.f32.gmra.mxu0 %v2015
    %v2263 = vpop.f32.mrf.mxu0
    %v2264 = vadd.f32 %v2244, %v2263
    %2265 = vdwg.mxu0
    %2266 = vmatpush.xpose.msra.mxu0 0.0
    %2267 = vmatpush.xpose.msra.mxu0 0.0
    %2268 = vmatpush.xpose.msra.mxu0 0.0
    %2269 = vmatpush.xpose.msra.mxu0 0.0
    %2270 = vmatpush.xpose.msra.mxu0 0.0
    %2271 = vmatpush.xpose.msra.mxu0 0.0
    %2272 = vmatpush.xpose.msra.mxu0 0.0
    %2273 = vmatpush.xpose.msra.mxu0 0.0
    %2274 = vmatpush.xpose.msra.mxu0 0.0
    %2275 = vmatpush.xpose.msra.mxu0 0.0
    %2276 = vmatpush.xpose.msra.mxu0 0.0
    %2277 = vmatpush.xpose.msra.mxu0 0.0
    %2278 = vmatpush.xpose.msra.mxu0 0.0
    %2279 = vmatpush.xpose.msra.mxu0 0.0
    %2280 = vmatpush.xpose.msra.mxu0 0.0
    %2281 = vmatpush.xpose.msra.mxu0 %v2082
    %2282 = vmatmul.f32.gmra.mxu0 %v2016
    %v2283 = vpop.f32.mrf.mxu0
    %v2284 = vadd.f32 %v2264, %v2283
    %2285 = vdwg.mxu0
    %2286 = vmatpush.xpose.msra.mxu0 0.0
    %2287 = vmatpush.xpose.msra.mxu0 0.0
    %2288 = vmatpush.xpose.msra.mxu0 0.0
    %2289 = vmatpush.xpose.msra.mxu0 0.0
    %2290 = vmatpush.xpose.msra.mxu0 0.0
    %2291 = vmatpush.xpose.msra.mxu0 0.0
    %2292 = vmatpush.xpose.msra.mxu0 0.0
    %2293 = vmatpush.xpose.msra.mxu0 0.0
    %2294 = vmatpush.xpose.msra.mxu0 0.0
    %2295 = vmatpush.xpose.msra.mxu0 0.0
    %2296 = vmatpush.xpose.msra.mxu0 0.0
    %2297 = vmatpush.xpose.msra.mxu0 0.0
    %2298 = vmatpush.xpose.msra.mxu0 0.0
    %2299 = vmatpush.xpose.msra.mxu0 0.0
    %2300 = vmatpush.xpose.msra.mxu0 0.0
    %2301 = vmatpush.xpose.msra.mxu0 %v2083
    %2302 = vmatmul.f32.gmra.mxu0 %v2017
    %v2303 = vpop.f32.mrf.mxu0
    %v2304 = vadd.f32 %v2284, %v2303
    %2305 = vdwg.mxu0
    %2306 = vmatpush.xpose.msra.mxu0 0.0
    %2307 = vmatpush.xpose.msra.mxu0 0.0
    %2308 = vmatpush.xpose.msra.mxu0 0.0
    %2309 = vmatpush.xpose.msra.mxu0 0.0
    %2310 = vmatpush.xpose.msra.mxu0 0.0
    %2311 = vmatpush.xpose.msra.mxu0 0.0
    %2312 = vmatpush.xpose.msra.mxu0 0.0
    %2313 = vmatpush.xpose.msra.mxu0 0.0
    %2314 = vmatpush.xpose.msra.mxu0 0.0
    %2315 = vmatpush.xpose.msra.mxu0 0.0
    %2316 = vmatpush.xpose.msra.mxu0 0.0
    %2317 = vmatpush.xpose.msra.mxu0 0.0
    %2318 = vmatpush.xpose.msra.mxu0 0.0
    %2319 = vmatpush.xpose.msra.mxu0 0.0
    %2320 = vmatpush.xpose.msra.mxu0 0.0
    %2321 = vmatpush.xpose.msra.mxu0 %v2084
    %2322 = vmatmul.f32.gmra.mxu0 %v2018
    %v2323 = vpop.f32.mrf.mxu0
    %v2324 = vadd.f32 %v2304, %v2323
    %2325 = vdwg.mxu0
    %s2326 = scalar_lea.vmem [#allocation21], 8
    %2327 = vst.msk [vmem:[%s2326] sm:$0xff] %vm1981, %v2324
    // Predicated region
    $region86: #{tpu_custom_call.1} parent=1 // pred_check
      _
    $region87: #{tpu_custom_call.1} parent=1 // pred_check_branch
      %2329 = sbr.rel (0) target = $region89
    $region88: #{tpu_custom_call.1} parent=1 // pred_region
      %2331 = vsyncadd [#allocation4], 0
      %s2333 = sshll.u32 [#allocation18], 4
      %s2334 = int_to_ptr.vmem [resolvable:$true] %s2333
      %s2335 = sshll.u32 %s12, 4
      %s2336 = int_to_ptr.hbm [resolvable:$true] %s2335
      %2338 = dma.vmem_to_hbm [thread:$0]  %s2334, 768, %s2336, [#allocation4]
    $region89: #{tpu_custom_call.1} parent=1 // pred_fallthru
      _
    // Predicated region
    $region90: #{tpu_custom_call.1} parent=1 // pred_check
      _
    $region91: #{tpu_custom_call.1} parent=1 // pred_check_branch
      %2340 = sbr.rel (0) target = $region93
    $region92: #{tpu_custom_call.1} parent=1 // pred_region
      %2342 = vsyncadd [#allocation20], 0
      %s2344 = sshll.u32 [#allocation19], 4
      %s2345 = int_to_ptr.vmem [resolvable:$true] %s2344
      %s2346 = sshll.u32 %s13, 4
      %s2347 = int_to_ptr.hbm [resolvable:$true] %s2346
      %2349 = dma.vmem_to_hbm [thread:$0]  %s2345, 128, %s2347, [#allocation20]
    $region93: #{tpu_custom_call.1} parent=1 // pred_fallthru
      _
    // Predicated region
    $region94: #{tpu_custom_call.1} parent=1 // pred_check
      _
    $region95: #{tpu_custom_call.1} parent=1 // pred_check_branch
      %2351 = sbr.rel (0) target = $region97
    $region96: #{tpu_custom_call.1} parent=1 // pred_region
      %2353 = vsyncadd [#allocation20], 0
      %s2354 = sshll.u32 [#allocation21], 4
      %s2355 = int_to_ptr.vmem [resolvable:$true] %s2354
      %s2356 = sshll.u32 %s14, 4
      %s2357 = int_to_ptr.hbm [resolvable:$true] %s2356
      %2362 = dma.vmem_to_hbm [thread:$0]  %s2355, 256, %s2357, [#allocation20], 128, 128, 8
    $region97: #{tpu_custom_call.1} parent=1 // pred_fallthru
      _
    // Predicated region
    $region98: #{tpu_custom_call.1} parent=1 // pred_check
      _
    $region99: #{tpu_custom_call.1} parent=1 // pred_check_branch
      %2364 = sbr.rel (0) target = $region101
    $region100: #{tpu_custom_call.1} parent=1 // pred_region
      %2366 = dma.done [#allocation4], 768
    $region101: #{tpu_custom_call.1} parent=1 // pred_fallthru
      _
    // Predicated region
    $region102: #{tpu_custom_call.1} parent=1 // pred_check
      _
    $region103: #{tpu_custom_call.1} parent=1 // pred_check_branch
      %2368 = sbr.rel (0) target = $region105
    $region104: #{tpu_custom_call.1} parent=1 // pred_region
      %2370 = dma.done [#allocation20], 128
    $region105: #{tpu_custom_call.1} parent=1 // pred_fallthru
      _
    // Predicated region
    $region106: #{tpu_custom_call.1} parent=1 // pred_check
      _
    $region107: #{tpu_custom_call.1} parent=1 // pred_check_branch
      %2372 = sbr.rel (0) target = $region109
    $region108: #{tpu_custom_call.1} parent=1 // pred_region
      %2374 = dma.done [#allocation20], 256
    $region109: #{tpu_custom_call.1} parent=1 // pred_fallthru
      _
    %2375 = vsyncpa [#allocation3], 1
    %2376 = vsyncpa [#allocation8], 1
    %2377 = vsyncpa [#allocation11], 1
    %2378 = vsyncpa [#allocation14], 1
    %2379 = vsyncpa [#allocation17], 1
    %2380 = vsyncpa [#allocation4], 1
    %2381 = vsyncpa [#allocation20], 1
    %2382 = vsyncpa [#allocation5], 1

</llo_original>
